<compile_context>
chip_gen: v7x
topology: tpu7x:2x2x1
jax: 0.10.0
libtpu: 0.0.40
codegen_flags: <defaults>
</compile_context>

<pallas_src>
import functools

import jax
import jax.numpy as jnp
from jax import lax
from jax.experimental import pallas as pl
from jax.experimental.pallas import tpu as pltpu

MiB = 1024 * 1024


# ---------------------------------------------------------------------------
# helpers
# ---------------------------------------------------------------------------
def _round_up(x, m):
    return (x + m - 1) // m * m


def _device_kind():
    try:
        return jax.devices()[0].device_kind.lower()
    except Exception:
        return ""


def _vmem_budget_and_limit():
    """Generation-aware VMEM budget (tile sizing) and Mosaic scoped-vmem limit."""
    try:
        cap = int(getattr(pltpu.get_tpu_info(), "vmem_capacity_bytes", 64 * MiB))
    except Exception:
        cap = 64 * MiB
    if cap >= 120 * MiB:            # v5e / v6e: 128 MiB of VMEM per TensorCore
        budget, limit = 96 * MiB, 110 * MiB
    else:                           # v7x: 64 MiB per TensorCore
        budget, limit = 40 * MiB, 52 * MiB
    limit = max(16 * MiB, min(limit, cap - 4 * MiB))
    return budget, limit


def _choose_tb(batch, vmem_fn, budget, two_cores):
    """Largest multiple-of-8 batch tile whose working set fits `budget`.

    On 2-TensorCore chips (v7x) keep >= 2 grid steps (both cores get work) and prefer
    an even grid-step count; on single-core chips (v5e/v6e) no such cap — one big tile
    minimizes per-step overhead."""
    b8 = _round_up(max(batch, 1), 8)
    cap = b8
    if two_cores and b8 >= 16:
        cap = max(8, (b8 // 2) // 8 * 8)
    fitting = [t for t in range(8, cap + 1, 8) if vmem_fn(t) <= budget] or [8]
    tb = fitting[-1]
    if two_cores:
        even = [t for t in fitting if (-(-b8 // t)) % 2 == 0]
        if even:
            tb = even[-1]
    return tb


# ---------------------------------------------------------------------------
# Pallas attention kernels
# ---------------------------------------------------------------------------
def _attention_tail(att1, att2, enc, wf, awe_ref, alpha_ref, p_valid):
    """Shared epilogue: ReLU, score reduce, masked softmax, attention-weighted sum."""
    tb, pp, a = att1.shape
    h = jnp.maximum(att1 + att2[:, None, :], 0.0)            # (TB, Pp, A)   VPU
    scores = jnp.sum(h * wf.reshape(1, 1, a), axis=-1)       # (TB, Pp) f32  lane reduce
    if p_valid != pp:  # static: mask zero-padded pixel rows out of the softmax
        pix = lax.broadcasted_iota(jnp.int32, (tb, pp), 1)
        scores = jnp.where(pix < p_valid, scores, -1e30)
    m = jnp.max(scores, axis=-1, keepdims=True)
    ex = jnp.exp(scores - m)
    s = jnp.sum(ex, axis=-1, keepdims=True)
    alpha = ex * pl.reciprocal(s, approx=True)                # EUP reciprocal
    alpha_ref[...] = alpha
    # attention-weighted encoding: VPU multiply + sublane reduce over pixels (f32).
    awe_ref[...] = jnp.sum(enc.astype(jnp.float32) * alpha[:, :, None], axis=1)


def _attention_kernel_fused(enc_ref, att2_ref, we_ref, wf_ref, awe_ref, alpha_ref, *,
                            p_valid):
    """Fused path (v6e/v7x): encoder projection computed on the MXU inside the kernel."""
    tb, pp, e = enc_ref.shape
    a = we_ref.shape[1]
    enc = enc_ref[...]                                        # (TB, Pp, E) bf16
    att1 = jnp.dot(enc.reshape(tb * pp, e), we_ref[...],
                   preferred_element_type=jnp.float32).reshape(tb, pp, a)
    _attention_tail(att1, att2_ref[...], enc, wf_ref[...], awe_ref, alpha_ref, p_valid)


def _attention_kernel_hoisted(enc_ref, att1_ref, att2_ref, wf_ref, awe_ref, alpha_ref,
                              *, p_valid):
    """Hoisted path (v5e): att1 = enc @ W_e^T precomputed once per sequence outside."""
    _attention_tail(att1_ref[...].astype(jnp.float32), att2_ref[...], enc_ref[...],
                    wf_ref[...], awe_ref, alpha_ref, p_valid)


# ---------------------------------------------------------------------------
# Attention wrapper (prepare once per sequence, apply once per timestep)
# ---------------------------------------------------------------------------
class PallasAttention:
    """show-attend-tell Attention with the hot path in a Pallas TPU kernel.

    Usage:  ctx = attn.prepare(encoder_out)     # pad + cast (+ att1) ONCE per sequence
            awe, alpha = attn(ctx, h_padded)    # once per timestep (h already (Bp, D))
    """

    def __init__(self, att_params, num_pixels, encoder_dim, decoder_dim, *,
                 hoist_att1=None):
        w_e, b_e, w_d, b_d, w_f, _b_f = att_params
        # full_att's scalar bias b_f is dropped: softmax over pixels is invariant to a
        # constant shift of every score, so alpha / awe are mathematically unchanged.
        a_dim = w_e.shape[0]
        self.a_pad = _round_up(a_dim, 128)
        pad = self.a_pad - a_dim
        self.we = jnp.pad(w_e.T, ((0, 0), (0, pad))).astype(jnp.bfloat16)   # (E, A_pad)
        self.wd = jnp.pad(w_d.T, ((0, 0), (0, pad))).astype(jnp.bfloat16)   # (D, A_pad)
        self.bias = jnp.pad(b_e + b_d, (0, pad)).astype(jnp.float32)        # b_e folded
        self.wf = jnp.pad(w_f[0], (0, pad)).reshape(1, self.a_pad).astype(jnp.float32)
        self.p = int(num_pixels)
        self.pp = _round_up(self.p, 8)
        self.e = int(encoder_dim)
        self.d = int(decoder_dim)

        kind = _device_kind()
        self.two_cores = "v7" in kind                   # v7x: 2 TensorCores per chip
        # v5e is MXU-bound at real sizes -> hoist the timestep-invariant encoder
        # projection out of the per-step kernel; v6e/v7x are HBM-bound -> keep it fused.
        self.hoist_att1 = ("v5" in kind) if hoist_att1 is None else bool(hoist_att1)
        self.vmem_budget, self.vmem_limit = _vmem_budget_and_limit()

    def _vmem_bytes(self, tb):
        """Double-buffered working set for one grid step, incl. the f32 encoder copy
        made for the awe reduce and the live att1/h intermediates."""
        pp, e, a = self.pp, self.e, self.a_pad
        enc_in = 2 * tb * pp * e * 2                          # bf16 encoder tile, 2 bufs
        att2_in = 2 * tb * a * 4
        att1_in = 2 * tb * pp * a * 2 if self.hoist_att1 else 0
        weights = (0 if self.hoist_att1 else 2 * e * a * 2) + 2 * a * 4
        outs = 2 * (tb * e + tb * pp) * 4
        interm = 2 * tb * pp * a * 4 + tb * pp * e * 4 + 4 * tb * pp * 4
        return enc_in + att2_in + att1_in + weights + outs + interm

    def prepare(self, encoder_out):
        """Pad batch/pixels and cast to bf16 ONCE per sequence (not per timestep)."""
        B, P, E = encoder_out.shape
        assert P == self.p and E == self.e
        tb = _choose_tb(B, self._vmem_bytes, self.vmem_budget, self.two_cores)
        bp = _round_up(B, tb)
        enc_pad = jnp.pad(encoder_out.astype(jnp.bfloat16),
                          ((0, bp - B), (0, self.pp - P), (0, 0)))
        ctx = {"enc": enc_pad, "bp": bp, "tb": tb}
        if self.hoist_att1:
            ctx["att1"] = jnp.einsum(
                "bpe,ea->bpa", enc_pad, self.we,
                preferred_element_type=jnp.float32).astype(jnp.bfloat16)
        return ctx

    def __call__(self, ctx, h):
        """h: (Bp, decoder_dim) f32, already padded. Returns awe (Bp, E), alpha (Bp, P)."""
        bp, tb = ctx["bp"], ctx["tb"]
        assert h.shape == (bp, self.d), (h.shape, bp, self.d)
        # tiny decoder projection at full batch in XLA (M=Bp, not M=TB), folded biases.
        att2 = jnp.dot(h.astype(jnp.bfloat16), self.wd,
                       preferred_element_type=jnp.float32) + self.bias      # (Bp, A_pad)

        pp, e, a = self.pp, self.e, self.a_pad
        grid = (bp // tb,)
        out_shape = (jax.ShapeDtypeStruct((bp, e), jnp.float32),
                     jax.ShapeDtypeStruct((bp, pp), jnp.float32))
        out_specs = (pl.BlockSpec((tb, e), lambda i: (i, 0)),      # awe (lane-dense)
                     pl.BlockSpec((tb, pp), lambda i: (i, 0)))     # alpha
        cparams = pltpu.CompilerParams(dimension_semantics=("parallel",),
                                       vmem_limit_bytes=self.vmem_limit)
        # TODO(synk): constant-index weight streams (we/wf) are still double-buffered by
        # the default pipeline; the VMEM estimate accounts for both buffers instead.
        # TODO(synk): finished captions (PyTorch's shrinking batch_size_t) are masked,
        # not skipped; a scalar-prefetched active count + pl.when could skip whole
        # TB-blocks late in the sequence.
        if self.hoist_att1:
            kernel = functools.partial(_attention_kernel_hoisted, p_valid=self.p)
            awe, alpha = pl.pallas_call(
                kernel, out_shape=out_shape, grid=grid,
                in_specs=[
                    pl.BlockSpec((tb, pp, e), lambda i: (i, 0, 0)),   # enc   (bf16)
                    pl.BlockSpec((tb, pp, a), lambda i: (i, 0, 0)),   # att1  (bf16)
                    pl.BlockSpec((tb, a), lambda i: (i, 0)),          # att2  (f32)
                    pl.BlockSpec((1, a), lambda i: (0, 0)),           # W_f row
                ],
                out_specs=out_specs, compiler_params=cparams,
            )(ctx["enc"], ctx["att1"], att2, self.wf)
        else:
            kernel = functools.partial(_attention_kernel_fused, p_valid=self.p)
            awe, alpha = pl.pallas_call(
                kernel, out_shape=out_shape, grid=grid,
                in_specs=[
                    pl.BlockSpec((tb, pp, e), lambda i: (i, 0, 0)),   # enc   (bf16)
                    pl.BlockSpec((tb, a), lambda i: (i, 0)),          # att2  (f32)
                    pl.BlockSpec((e, a), lambda i: (0, 0)),           # W_e^T (bf16)
                    pl.BlockSpec((1, a), lambda i: (0, 0)),           # W_f row
                ],
                out_specs=out_specs, compiler_params=cparams,
            )(ctx["enc"], att2, self.we, self.wf)
        return awe, alpha[:, :self.p]


def attention_pallas(encoder_out, decoder_hidden, attn):
    """Standalone Attention.forward: encoder_out (B, P, E), decoder_hidden (B, D)."""
    B = encoder_out.shape[0]
    ctx = attn.prepare(encoder_out)
    h = decoder_hidden.astype(jnp.float32)
    if ctx["bp"] != B:
        h = jnp.pad(h, ((0, ctx["bp"] - B), (0, 0)))
    awe, alpha = attn(ctx, h)
    return awe[:B], alpha[:B]


# ---------------------------------------------------------------------------
# references
# ---------------------------------------------------------------------------
def attention_ref_f32(encoder_out, decoder_hidden, att_params):
    """Pure f32 reference matching the PyTorch Attention.forward exactly."""
    w_e, b_e, w_d, b_d, w_f, b_f = att_params
    enc = encoder_out.astype(jnp.float32)
    dec = decoder_hidden.astype(jnp.float32)
    att1 = enc @ w_e.T + b_e
    att2 = dec @ w_d.T + b_d
    att = jnp.maximum(att1 + att2[:, None, :], 0.0) @ w_f[0] + b_f[0]
    alpha = jax.nn.softmax(att, axis=1)
    awe = jnp.sum(enc * alpha[:, :, None], axis=1)
    return awe, alpha


def attention_ref_matched(encoder_out, decoder_hidden, att_params):
    """Mirrors the kernel's precision: bf16 matmul operands / bf16 encoder, f32 accum."""
    w_e, b_e, w_d, b_d, w_f, b_f = att_params
    enc_bf = encoder_out.astype(jnp.bfloat16)
    att1 = jnp.einsum("bpe,ea->bpa", enc_bf, w_e.T.astype(jnp.bfloat16),
                      preferred_element_type=jnp.float32) + b_e
    att2 = jnp.einsum("bd,da->ba", decoder_hidden.astype(jnp.bfloat16),
                      w_d.T.astype(jnp.bfloat16),
                      preferred_element_type=jnp.float32) + b_d
    h = jnp.maximum(att1 + att2[:, None, :], 0.0)
    att = jnp.sum(h * w_f[0], axis=-1) + b_f[0]
    alpha = jax.nn.softmax(att, axis=-1)
    awe = jnp.sum(enc_bf.astype(jnp.float32) * alpha[:, :, None], axis=1)
    return awe, alpha


class ReferenceAttention:
    """Same prepare/apply interface as PallasAttention, pure XLA, kernel-matched precision."""

    def __init__(self, att_params):
        self.att_params = att_params

    def prepare(self, encoder_out):
        return {"enc": encoder_out, "bp": encoder_out.shape[0]}

    def __call__(self, ctx, h):
        return attention_ref_matched(ctx["enc"], h, self.att_params)


# ---------------------------------------------------------------------------
# DecoderWithAttention.forward (non-BERT path), time loop as lax.scan
# ---------------------------------------------------------------------------
def decoder_with_attention_forward(encoder_out, encoded_captions, caption_lengths,
                                   dec_params, attention):
    """JAX port of DecoderWithAttention.forward (eval-mode dropout, non-BERT path).

    `attention` exposes .prepare(enc) (once per call) and __call__(ctx, h) per step.
    The shrinking batch_size_t of the PyTorch loop is realised by masking the sorted
    (hence prefix-active) batch; the whole time loop runs as a single lax.scan."""
    B = encoder_out.shape[0]
    E = encoder_out.shape[-1]
    enc = encoder_out.reshape(B, -1, E)
    P = enc.shape[1]

    lens = caption_lengths[:, 0]
    sort_ind = jnp.argsort(-lens)                     # descending sort, like PyTorch
    lens = lens[sort_ind]
    enc = enc[sort_ind].astype(jnp.float32)
    caps = encoded_captions[sort_ind]

    emb = dec_params["embedding"][caps]               # (B, L, EMB)
    mean_enc = enc.mean(axis=1)
    w, b = dec_params["init_h"]
    h0 = mean_enc @ w.T + b
    w, b = dec_params["init_c"]
    c0 = mean_enc @ w.T + b

    decode_lengths = lens - 1
    T = int(jnp.max(decode_lengths))

    ctx = attention.prepare(enc)                      # pad + bf16 cast (+ att1) ONCE
    bp = ctx["bp"]
    pad_rows = bp - B

    def pad_b(x):
        if pad_rows == 0:
            return x
        return jnp.pad(x, ((0, pad_rows),) + ((0, 0),) * (x.ndim - 1))

    h0, c0 = pad_b(h0), pad_b(c0)
    emb_steps = jnp.transpose(pad_b(emb)[:, :T, :], (1, 0, 2))          # (T, Bp, EMB)
    dl_pad = pad_b(decode_lengths)
    active = (dl_pad[None, :] > jnp.arange(T)[:, None]).astype(jnp.float32)[:, :, None]

    w_fb, b_fb = dec_params["f_beta"]
    w_ih, b_ih = dec_params["w_ih"], dec_params["b_ih"]
    w_hh, b_hh = dec_params["w_hh"], dec_params["b_hh"]
    w_fc, b_fc = dec_params["fc"]

    def step(carry, xs):
        h, c = carry
        emb_t, act = xs
        awe, alpha = attention(ctx, h)                                  # Pallas / ref
        gate = jax.nn.sigmoid(h @ w_fb.T + b_fb)
        awe = gate * awe
        x = jnp.concatenate([emb_t, awe], axis=1)
        gates = x @ w_ih.T + b_ih + h @ w_hh.T + b_hh                   # LSTMCell
        i_g, f_g, g_g, o_g = jnp.split(gates, 4, axis=1)
        c_new = jax.nn.sigmoid(f_g) * c + jax.nn.sigmoid(i_g) * jnp.tanh(g_g)
        h_new = jax.nn.sigmoid(o_g) * jnp.tanh(c_new)
        # TODO(synk): nn.Dropout before fc is treated as identity (eval mode).
        preds = h_new @ w_fc.T + b_fc
        h = h + act * (h_new - h)
        c = c + act * (c_new - c)
        return (h, c), (preds * act, alpha * act)

    _, (preds_t, alphas_t) = lax.scan(step, (h0, c0), (emb_steps, active))
    predictions = jnp.transpose(preds_t, (1, 0, 2))[:B]
    alphas = jnp.transpose(alphas_t, (1, 0, 2))[:B]
    return predictions, caps, decode_lengths, alphas, sort_ind


# ---------------------------------------------------------------------------
# demo / correctness check
# ---------------------------------------------------------------------------
if __name__ == "__main__":
    B, Him, Wim = 12, 5, 5
    E, D, A = 64, 64, 32
    V, EMB, L = 50, 32, 7
    P = Him * Wim

    key = jax.random.PRNGKey(0)
    ks = jax.random.split(key, 20)
    s = 0.1

    encoder_out_4d = jax.random.normal(ks[0], (B, Him, Wim, E), jnp.float32)
    decoder_hidden = jax.random.normal(ks[1], (B, D), jnp.float32)

    # Attention params in PyTorch nn.Linear layout.
    att_params = (
        jax.random.normal(ks[2], (A, E)) * s,   # encoder_att.weight
        jax.random.normal(ks[3], (A,)) * s,     # encoder_att.bias
        jax.random.normal(ks[4], (A, D)) * s,   # decoder_att.weight
        jax.random.normal(ks[5], (A,)) * s,     # decoder_att.bias
        jax.random.normal(ks[6], (1, A)) * s,   # full_att.weight
        jax.random.normal(ks[7], (1,)) * s,     # full_att.bias
    )

    enc_flat = encoder_out_4d.reshape(B, P, E)
    awe_m, alpha_m = attention_ref_matched(enc_flat, decoder_hidden, att_params)
    awe_f, alpha_f = attention_ref_f32(enc_flat, decoder_hidden, att_params)

    # --- standalone Attention kernel check: exercise BOTH kernel variants ----------
    for hoist in (False, True):
        attn = PallasAttention(att_params, P, E, D, hoist_att1=hoist)
        awe, alpha = attention_pallas(enc_flat, decoder_hidden, attn)
        jax.block_until_ready((awe, alpha))
        assert awe.shape == (B, E) and alpha.shape == (B, P)
        assert jnp.allclose(jnp.sum(alpha, axis=1), 1.0, atol=5e-3)
        assert jnp.allclose(alpha, alpha_m, rtol=1e-2, atol=1e-3)
        assert jnp.allclose(awe, awe_m, rtol=1e-2, atol=1e-3)
        assert jnp.allclose(alpha, alpha_f, rtol=5e-2, atol=5e-3)
        assert jnp.allclose(awe, awe_f, rtol=5e-2, atol=5e-3)

    # --- full DecoderWithAttention forward, Pallas attention vs matched reference --
    def lin(k, out_dim, in_dim, scale=0.1):
        kw, kb = jax.random.split(k)
        return (jax.random.normal(kw, (out_dim, in_dim)) * scale,
                jax.random.normal(kb, (out_dim,)) * scale)

    w_ih, b_ih = lin(ks[13], 4 * D, EMB + E)
    w_hh, b_hh = lin(ks[14], 4 * D, D)
    dec_params = dict(
        embedding=jax.random.uniform(ks[15], (V, EMB), minval=-0.1, maxval=0.1),
        init_h=lin(ks[9], D, E),
        init_c=lin(ks[10], D, E),
        f_beta=lin(ks[11], E, D),
        fc=lin(ks[12], V, D),
        w_ih=w_ih, b_ih=b_ih, w_hh=w_hh, b_hh=b_hh,
    )

    encoded_captions = jax.random.randint(ks[8], (B, L), 0, V)
    caption_lengths = jnp.array(
        [[7], [6], [6], [5], [4], [7], [3], [5], [6], [4], [7], [2]], dtype=jnp.int32)

    pallas_attn = PallasAttention(att_params, P, E, D)      # chip-default variant
    preds_p, caps_p, dl_p, alphas_p, si_p = decoder_with_attention_forward(
        encoder_out_4d, encoded_captions, caption_lengths, dec_params, pallas_attn)
    jax.block_until_ready((preds_p, alphas_p))

    ref_attn = ReferenceAttention(att_params)
    preds_r, _, _, alphas_r, _ = decoder_with_attention_forward(
        encoder_out_4d, encoded_captions, caption_lengths, dec_params, ref_attn)

    assert jnp.allclose(preds_p, preds_r, rtol=2e-2, atol=2e-3)
    assert jnp.allclose(alphas_p, alphas_r, rtol=2e-2, atol=2e-3)

    print("KERNEL_OK")
</pallas_src>

<mosaic_0001>
module attributes {stable_mosaic.version = 11 : i64} {
  func.func @_attention_kernel_fused(%arg0: i32, %arg1: memref<16x32x64xbf16, #tpu.memory_space<vmem>>, %arg2: memref<16x128xf32, #tpu.memory_space<vmem>>, %arg3: memref<64x128xbf16, #tpu.memory_space<vmem>>, %arg4: memref<1x128xf32, #tpu.memory_space<vmem>>, %arg5: memref<16x64xf32, #tpu.memory_space<vmem>>, %arg6: memref<16x32xf32, #tpu.memory_space<vmem>>) attributes {dimension_semantics = [#tpu.dimension_semantics<parallel>], iteration_bounds = array<i64: 1>, scalar_prefetch = 0 : i64, scratch_operands = 0 : i64, tpu.core_type = #tpu.core_type<tc>, window_params = [{transform_indices = @transform_0, window_bounds = array<i64: 16, 32, 64>}, {transform_indices = @transform_1, window_bounds = array<i64: 16, 128>}, {pipeline_mode = #tpu.pipeline_mode<synchronous>, transform_indices = @transform_2, window_bounds = array<i64: 64, 128>}, {pipeline_mode = #tpu.pipeline_mode<synchronous>, transform_indices = @transform_3, window_bounds = array<i64: 1, 128>}, {transform_indices = @transform_4, window_bounds = array<i64: 16, 64>}, {transform_indices = @transform_5, window_bounds = array<i64: 16, 32>}]} {
    %c0 = arith.constant 0 : index
    %c0_0 = arith.constant 0 : index
    %c0_1 = arith.constant 0 : index
    %0 = vector.load %arg1[%c0, %c0_0, %c0_1] : memref<16x32x64xbf16, #tpu.memory_space<vmem>>, vector<16x32x64xbf16>
    %1 = vector.shape_cast %0 : vector<16x32x64xbf16> to vector<512x64xbf16>
    %c0_2 = arith.constant 0 : index
    %c0_3 = arith.constant 0 : index
    %2 = vector.load %arg3[%c0_2, %c0_3] : memref<64x128xbf16, #tpu.memory_space<vmem>>, vector<64x128xbf16>
    %cst = arith.constant dense<0.000000e+00> : vector<512x128xf32>
    %3 = tpu.matmul %1, %2, %cst {dimension_numbers = #tpu.dot_dimension_numbers<[1], [0], [0], [1], [0, 0, 1, 1], [], []>} : vector<512x64xbf16>, vector<64x128xbf16>, vector<512x128xf32> -> vector<512x128xf32>
    %4 = vector.shape_cast %3 : vector<512x128xf32> to vector<16x32x128xf32>
    %c0_4 = arith.constant 0 : index
    %c0_5 = arith.constant 0 : index
    %5 = vector.load %arg2[%c0_4, %c0_5] : memref<16x128xf32, #tpu.memory_space<vmem>>, vector<16x128xf32>
    %c0_6 = arith.constant 0 : index
    %c0_7 = arith.constant 0 : index
    %6 = vector.load %arg4[%c0_6, %c0_7] : memref<1x128xf32, #tpu.memory_space<vmem>>, vector<1x128xf32>
    %7 = vector.shape_cast %5 : vector<16x128xf32> to vector<16x1x128xf32>
    %8 = vector.broadcast %7 : vector<16x1x128xf32> to vector<16x32x128xf32>
    %9 = arith.addf %4, %8 : vector<16x32x128xf32>
    %cst_8 = arith.constant 0.000000e+00 : f32
    %10 = vector.broadcast %cst_8 : f32 to vector<16x32x128xf32>
    %11 = arith.maximumf %9, %10 : vector<16x32x128xf32>
    %12 = vector.shape_cast %6 : vector<1x128xf32> to vector<1x1x128xf32>
    %13 = vector.broadcast %12 : vector<1x1x128xf32> to vector<16x32x128xf32>
    %14 = arith.mulf %11, %13 : vector<16x32x128xf32>
    %cst_9 = arith.constant dense<0.000000e+00> : vector<16x32xf32>
    %15 = vector.multi_reduction <add>, %14, %cst_9 [2] : vector<16x32x128xf32> to vector<16x32xf32>
    %16 = tpu.iota {dimensions = array<i32: 1>} : vector<16x32xi32>
    %c25_i32 = arith.constant 25 : i32
    %17 = vector.broadcast %c25_i32 : i32 to vector<16x32xi32>
    %18 = arith.cmpi slt, %16, %17 : vector<16x32xi32>
    %cst_10 = arith.constant -1.000000e+30 : f32
    %19 = vector.broadcast %cst_10 : f32 to vector<16x32xf32>
    %20 = arith.select %18, %15, %19 : vector<16x32xi1>, vector<16x32xf32>
    %cst_11 = arith.constant dense<0xFF800000> : vector<16xf32>
    %21 = vector.multi_reduction <maximumf>, %20, %cst_11 [1] : vector<16x32xf32> to vector<16xf32>
    %22 = vector.shape_cast %21 : vector<16xf32> to vector<16x1xf32>
    %23 = vector.broadcast %22 : vector<16x1xf32> to vector<16x32xf32>
    %24 = arith.subf %20, %23 : vector<16x32xf32>
    %25 = math.exp %24 : vector<16x32xf32>
    %cst_12 = arith.constant dense<0.000000e+00> : vector<16xf32>
    %26 = vector.multi_reduction <add>, %25, %cst_12 [1] : vector<16x32xf32> to vector<16xf32>
    %27 = vector.shape_cast %26 : vector<16xf32> to vector<16x1xf32>
    %28 = tpu.reciprocal %27 {approx = true} : vector<16x1xf32> -> vector<16x1xf32>
    %29 = vector.broadcast %28 : vector<16x1xf32> to vector<16x32xf32>
    %30 = arith.mulf %25, %29 : vector<16x32xf32>
    %c0_13 = arith.constant 0 : index
    %c0_14 = arith.constant 0 : index
    %31 = vector.load %arg6[%c0_13, %c0_14] : memref<16x32xf32, #tpu.memory_space<vmem>>, vector<16x32xf32>
    tpu.vector_store %arg6[%c0_13, %c0_14], %30 {strides = array<i32>} : memref<16x32xf32, #tpu.memory_space<vmem>>, vector<16x32xf32>,
    %32 = arith.extf %0 : vector<16x32x64xbf16> to vector<16x32x64xf32>
    %33 = vector.shape_cast %30 : vector<16x32xf32> to vector<16x32x1xf32>
    %34 = vector.broadcast %33 : vector<16x32x1xf32> to vector<16x32x64xf32>
    %35 = arith.mulf %32, %34 : vector<16x32x64xf32>
    %cst_15 = arith.constant dense<0.000000e+00> : vector<16x64xf32>
    %36 = vector.multi_reduction <add>, %35, %cst_15 [1] : vector<16x32x64xf32> to vector<16x64xf32>
    %c0_16 = arith.constant 0 : index
    %c0_17 = arith.constant 0 : index
    %37 = vector.load %arg5[%c0_16, %c0_17] : memref<16x64xf32, #tpu.memory_space<vmem>>, vector<16x64xf32>
    tpu.vector_store %arg5[%c0_16, %c0_17], %36 {strides = array<i32>} : memref<16x64xf32, #tpu.memory_space<vmem>>, vector<16x64xf32>,
    return
  }
  func.func @transform_0(%arg0: i32) -> (i32, i32, i32) {
    %c0_i32 = arith.constant 0 : i32
    %c0_i32_0 = arith.constant 0 : i32
    %c0_i32_1 = arith.constant 0 : i32
    return %arg0, %c0_i32, %c0_i32_0 : i32, i32, i32
  }
  func.func @transform_1(%arg0: i32) -> (i32, i32) {
    %c0_i32 = arith.constant 0 : i32
    %c0_i32_0 = arith.constant 0 : i32
    return %arg0, %c0_i32 : i32, i32
  }
  func.func @transform_2(%arg0: i32) -> (i32, i32) {
    %c0_i32 = arith.constant 0 : i32
    %c0_i32_0 = arith.constant 0 : i32
    %c0_i32_1 = arith.constant 0 : i32
    return %c0_i32, %c0_i32_0 : i32, i32
  }
  func.func @transform_3(%arg0: i32) -> (i32, i32) {
    %c0_i32 = arith.constant 0 : i32
    %c0_i32_0 = arith.constant 0 : i32
    %c0_i32_1 = arith.constant 0 : i32
    return %c0_i32, %c0_i32_0 : i32, i32
  }
  func.func @transform_4(%arg0: i32) -> (i32, i32) {
    %c0_i32 = arith.constant 0 : i32
    %c0_i32_0 = arith.constant 0 : i32
    return %arg0, %c0_i32 : i32, i32
  }
  func.func @transform_5(%arg0: i32) -> (i32, i32) {
    %c0_i32 = arith.constant 0 : i32
    %c0_i32_0 = arith.constant 0 : i32
    return %arg0, %c0_i32 : i32, i32
  }
}

</mosaic_0001>

<llo_original>
// kernel: tpu_custom_call.1
$region0: #{tpu_custom_call.1}
  #allocation0 [shape = 'u32[]', space=smem, size = 0x4, offset = 0x4, fixed_abs, tag = 'smem constant byte address 0x4 - core index']
  #allocation1 [shape = 'u32[144,128]{1,0:T(1,128)}', space=vmem, size = 0x12000, scoped, tag = 'internal scratch']
  %s0 = inlined_call_operand.hbm [shape: bf16[16,32,64], index: 0, kind: input, shape index: {}]
  %s1 = inlined_call_operand.hbm [shape: f32[16,128], index: 1, kind: input, shape index: {}]
  %s2 = inlined_call_operand.hbm [shape: bf16[64,128], index: 2, kind: input, shape index: {}]
  %s3 = inlined_call_operand.vmem [shape: f32[1,128], index: 3, kind: input, shape index: {}]
  %s4 = inlined_call_operand.hbm [shape: f32[16,64], index: 4, kind: output, shape index: {0}]
  %s5 = inlined_call_operand.hbm [shape: f32[16,32], index: 5, kind: output, shape index: {1}]
  %6 = xla_tuple %s4, %s5
  %s7 = sld [smem:[#allocation0]]
  $region46: #{tpu_custom_call.1} parent=0
    _
  %s9 = ssub.s32 1, %s7
  %s10 = scalar_select 0, %s9, %s7
  $region1: #{tpu_custom_call.1} parent=0
    #allocation2 [shape = 'u8[131072]{0}', space=vmem, size = 0x20000, scoped, tag = 'input window, operand 0, single buffered']
    #allocation3 [shape = 's32[1]{0}', space=sflag, size = 0x4, scoped, tag = 'scoped memory for tpu_custom_call.1']
    #allocation4 [shape = 's32[1]{0}', space=sflag, size = 0x4, scoped, tag = 'scoped memory for tpu_custom_call.1']
    #allocation5 [shape = 'u8[8192]{0}', space=vmem, size = 0x2000, scoped, tag = 'input window, operand 1, single buffered']
    #allocation6 [shape = 's32[1]{0}', space=sflag, size = 0x4, scoped, tag = 'scoped memory for tpu_custom_call.1']
    #allocation7 [shape = 'u8[16384]{0}', space=vmem, size = 0x4000, scoped, tag = 'input window, operand 2, single buffered']
    #allocation8 [shape = 'u8[8192]{0}', space=vmem, size = 0x2000, scoped, tag = 'output window, operand 0, single buffered']
    #allocation9 [shape = 'u8[8192]{0}', space=vmem, size = 0x2000, scoped, tag = 'output window, operand 1, single buffered']
    #allocation10 [shape = 's32[1]{0}', space=sflag, size = 0x4, scoped, tag = 'scoped memory for tpu_custom_call.1']
    %11 = vsyncpa [#allocation3], 0
    %12 = vsyncpa [#allocation6], 0
    %13 = vsyncpa [#allocation4], 0
    %14 = vsyncpa [#allocation10], 0
    // Predicated region
    $region2: #{tpu_custom_call.1} parent=1 // pred_check
      _
    $region3: #{tpu_custom_call.1} parent=1 // pred_check_branch
      %16 = sbr.rel (0) target = $region5
    $region4: #{tpu_custom_call.1} parent=1 // pred_region
      %s18 = ssub.s32 4096, 4096
      %19 = vsyncadd [#allocation3], %s18
      %s20 = sshll.u32 [#allocation2], 4
      %s21 = int_to_ptr.vmem [resolvable:$true] %s20
      %26 = dma.hbm_to_vmem [thread:$0]  %s0, 4096, %s21, [#allocation3], 64, 64, 4
    $region5: #{tpu_custom_call.1} parent=1 // pred_fallthru
      _
    // Predicated region
    $region6: #{tpu_custom_call.1} parent=1 // pred_check
      _
    $region7: #{tpu_custom_call.1} parent=1 // pred_check_branch
      %28 = sbr.rel (0) target = $region9
    $region8: #{tpu_custom_call.1} parent=1 // pred_region
      %s30 = ssub.s32 256, 256
      %31 = vsyncadd [#allocation6], %s30
      %s32 = sshll.u32 [#allocation5], 4
      %s33 = int_to_ptr.vmem [resolvable:$true] %s32
      %38 = dma.hbm_to_vmem [thread:$0]  %s1, 256, %s33, [#allocation6], 128, 128, 8
    $region9: #{tpu_custom_call.1} parent=1 // pred_fallthru
      _
    // Predicated region
    $region10: #{tpu_custom_call.1} parent=1 // pred_check
      _
    $region11: #{tpu_custom_call.1} parent=1 // pred_check_branch
      %40 = sbr.rel (0) target = $region13
    $region12: #{tpu_custom_call.1} parent=1 // pred_region
      %s42 = ssub.s32 512, 512
      %43 = vsyncadd [#allocation6], %s42
      %s44 = sshll.u32 [#allocation7], 4
      %s45 = int_to_ptr.vmem [resolvable:$true] %s44
      %50 = dma.hbm_to_vmem [thread:$0]  %s2, 512, %s45, [#allocation6], 64, 64, 4
    $region13: #{tpu_custom_call.1} parent=1 // pred_fallthru
      _
    // Predicated region
    $region14: #{tpu_custom_call.1} parent=1 // pred_check
      _
    $region15: #{tpu_custom_call.1} parent=1 // pred_check_branch
      %52 = sbr.rel (0) target = $region17
    $region16: #{tpu_custom_call.1} parent=1 // pred_region
      _
    $region17: #{tpu_custom_call.1} parent=1 // pred_fallthru
      _
    // Predicated region
    $region18: #{tpu_custom_call.1} parent=1 // pred_check
      _
    $region19: #{tpu_custom_call.1} parent=1 // pred_check_branch
      %54 = sbr.rel (0) target = $region21
    $region20: #{tpu_custom_call.1} parent=1 // pred_region
      %55 = dma.done [#allocation3], 4096
    $region21: #{tpu_custom_call.1} parent=1 // pred_fallthru
      _
    // Predicated region
    $region22: #{tpu_custom_call.1} parent=1 // pred_check
      _
    $region23: #{tpu_custom_call.1} parent=1 // pred_check_branch
      %57 = sbr.rel (0) target = $region25
    $region24: #{tpu_custom_call.1} parent=1 // pred_region
      %58 = dma.done [#allocation6], 256
    $region25: #{tpu_custom_call.1} parent=1 // pred_fallthru
      _
    // Predicated region
    $region26: #{tpu_custom_call.1} parent=1 // pred_check
      _
    $region27: #{tpu_custom_call.1} parent=1 // pred_check_branch
      %60 = sbr.rel (0) target = $region29
    $region28: #{tpu_custom_call.1} parent=1 // pred_region
      %61 = dma.done [#allocation6], 512
    $region29: #{tpu_custom_call.1} parent=1 // pred_fallthru
      _
    %v63 = vld [vmem:[#allocation2] sm:$0xf]
    %v64 = vld [vmem:[#allocation2 + $0x4] sm:$0xf]
    %v65 = vld [vmem:[#allocation2 + $0x8] sm:$0xf]
    %v66 = vld [vmem:[#allocation2 + $0xc] sm:$0xf]
    %v67 = vld [vmem:[#allocation2 + $0x10] sm:$0xf]
    %v68 = vld [vmem:[#allocation2 + $0x14] sm:$0xf]
    %v69 = vld [vmem:[#allocation2 + $0x18] sm:$0xf]
    %v70 = vld [vmem:[#allocation2 + $0x1c] sm:$0xf]
    %v71 = vld [vmem:[#allocation2 + $0x20] sm:$0xf]
    %v72 = vld [vmem:[#allocation2 + $0x24] sm:$0xf]
    %v73 = vld [vmem:[#allocation2 + $0x28] sm:$0xf]
    %v74 = vld [vmem:[#allocation2 + $0x2c] sm:$0xf]
    %v75 = vld [vmem:[#allocation2 + $0x30] sm:$0xf]
    %v76 = vld [vmem:[#allocation2 + $0x34] sm:$0xf]
    %v77 = vld [vmem:[#allocation2 + $0x38] sm:$0xf]
    %v78 = vld [vmem:[#allocation2 + $0x3c] sm:$0xf]
    %v79 = vld [vmem:[#allocation2 + $0x40] sm:$0xf]
    %v80 = vld [vmem:[#allocation2 + $0x44] sm:$0xf]
    %v81 = vld [vmem:[#allocation2 + $0x48] sm:$0xf]
    %v82 = vld [vmem:[#allocation2 + $0x4c] sm:$0xf]
    %v83 = vld [vmem:[#allocation2 + $0x50] sm:$0xf]
    %v84 = vld [vmem:[#allocation2 + $0x54] sm:$0xf]
    %v85 = vld [vmem:[#allocation2 + $0x58] sm:$0xf]
    %v86 = vld [vmem:[#allocation2 + $0x5c] sm:$0xf]
    %v87 = vld [vmem:[#allocation2 + $0x60] sm:$0xf]
    %v88 = vld [vmem:[#allocation2 + $0x64] sm:$0xf]
    %v89 = vld [vmem:[#allocation2 + $0x68] sm:$0xf]
    %v90 = vld [vmem:[#allocation2 + $0x6c] sm:$0xf]
    %v91 = vld [vmem:[#allocation2 + $0x70] sm:$0xf]
    %v92 = vld [vmem:[#allocation2 + $0x74] sm:$0xf]
    %v93 = vld [vmem:[#allocation2 + $0x78] sm:$0xf]
    %v94 = vld [vmem:[#allocation2 + $0x7c] sm:$0xf]
    %v95 = vld [vmem:[#allocation2 + $0x80] sm:$0xf]
    %v96 = vld [vmem:[#allocation2 + $0x84] sm:$0xf]
    %v97 = vld [vmem:[#allocation2 + $0x88] sm:$0xf]
    %v98 = vld [vmem:[#allocation2 + $0x8c] sm:$0xf]
    %v99 = vld [vmem:[#allocation2 + $0x90] sm:$0xf]
    %v100 = vld [vmem:[#allocation2 + $0x94] sm:$0xf]
    %v101 = vld [vmem:[#allocation2 + $0x98] sm:$0xf]
    %v102 = vld [vmem:[#allocation2 + $0x9c] sm:$0xf]
    %v103 = vld [vmem:[#allocation2 + $0xa0] sm:$0xf]
    %v104 = vld [vmem:[#allocation2 + $0xa4] sm:$0xf]
    %v105 = vld [vmem:[#allocation2 + $0xa8] sm:$0xf]
    %v106 = vld [vmem:[#allocation2 + $0xac] sm:$0xf]
    %v107 = vld [vmem:[#allocation2 + $0xb0] sm:$0xf]
    %v108 = vld [vmem:[#allocation2 + $0xb4] sm:$0xf]
    %v109 = vld [vmem:[#allocation2 + $0xb8] sm:$0xf]
    %v110 = vld [vmem:[#allocation2 + $0xbc] sm:$0xf]
    %v111 = vld [vmem:[#allocation2 + $0xc0] sm:$0xf]
    %v112 = vld [vmem:[#allocation2 + $0xc4] sm:$0xf]
    %v113 = vld [vmem:[#allocation2 + $0xc8] sm:$0xf]
    %v114 = vld [vmem:[#allocation2 + $0xcc] sm:$0xf]
    %v115 = vld [vmem:[#allocation2 + $0xd0] sm:$0xf]
    %v116 = vld [vmem:[#allocation2 + $0xd4] sm:$0xf]
    %v117 = vld [vmem:[#allocation2 + $0xd8] sm:$0xf]
    %v118 = vld [vmem:[#allocation2 + $0xdc] sm:$0xf]
    %v119 = vld [vmem:[#allocation2 + $0xe0] sm:$0xf]
    %v120 = vld [vmem:[#allocation2 + $0xe4] sm:$0xf]
    %v121 = vld [vmem:[#allocation2 + $0xe8] sm:$0xf]
    %v122 = vld [vmem:[#allocation2 + $0xec] sm:$0xf]
    %v123 = vld [vmem:[#allocation2 + $0xf0] sm:$0xf]
    %v124 = vld [vmem:[#allocation2 + $0xf4] sm:$0xf]
    %v125 = vld [vmem:[#allocation2 + $0xf8] sm:$0xf]
    %v126 = vld [vmem:[#allocation2 + $0xfc] sm:$0xf]
    %v127 = vld [vmem:[#allocation7] sm:$0xf]
    %v128 = vld [vmem:[#allocation7 + $0x4] sm:$0xf]
    %v129 = vld [vmem:[#allocation7 + $0x8] sm:$0xf]
    %v130 = vld [vmem:[#allocation7 + $0xc] sm:$0xf]
    %v131 = vld [vmem:[#allocation7 + $0x10] sm:$0xf]
    %v132 = vld [vmem:[#allocation7 + $0x14] sm:$0xf]
    %v133 = vld [vmem:[#allocation7 + $0x18] sm:$0xf]
    %v134 = vld [vmem:[#allocation7 + $0x1c] sm:$0xf]
    %v199 = vunpack.c.l.b16 %v63
    %v200 = vunpack.c.l.b16 %v64
    %v201 = vunpack.c.l.b16 %v65
    %v202 = vunpack.c.l.b16 %v66
    %v203 = vunpack.c.l.b16 %v67
    %v204 = vunpack.c.l.b16 %v68
    %v205 = vunpack.c.l.b16 %v69
    %v206 = vunpack.c.l.b16 %v70
    %v207 = vunpack.c.l.b16 %v71
    %v208 = vunpack.c.l.b16 %v72
    %v209 = vunpack.c.l.b16 %v73
    %v210 = vunpack.c.l.b16 %v74
    %v211 = vunpack.c.l.b16 %v75
    %v212 = vunpack.c.l.b16 %v76
    %v213 = vunpack.c.l.b16 %v77
    %v214 = vunpack.c.l.b16 %v78
    %v215 = vunpack.c.l.b16 %v79
    %v216 = vunpack.c.l.b16 %v80
    %v217 = vunpack.c.l.b16 %v81
    %v218 = vunpack.c.l.b16 %v82
    %v219 = vunpack.c.l.b16 %v83
    %v220 = vunpack.c.l.b16 %v84
    %v221 = vunpack.c.l.b16 %v85
    %v222 = vunpack.c.l.b16 %v86
    %v223 = vunpack.c.l.b16 %v87
    %v224 = vunpack.c.l.b16 %v88
    %v225 = vunpack.c.l.b16 %v89
    %v226 = vunpack.c.l.b16 %v90
    %v227 = vunpack.c.l.b16 %v91
    %v228 = vunpack.c.l.b16 %v92
    %v229 = vunpack.c.l.b16 %v93
    %v230 = vunpack.c.l.b16 %v94
    %v231 = vunpack.c.l.b16 %v95
    %v232 = vunpack.c.l.b16 %v96
    %v233 = vunpack.c.l.b16 %v97
    %v234 = vunpack.c.l.b16 %v98
    %v235 = vunpack.c.l.b16 %v99
    %v236 = vunpack.c.l.b16 %v100
    %v237 = vunpack.c.l.b16 %v101
    %v238 = vunpack.c.l.b16 %v102
    %v239 = vunpack.c.l.b16 %v103
    %v240 = vunpack.c.l.b16 %v104
    %v241 = vunpack.c.l.b16 %v105
    %v242 = vunpack.c.l.b16 %v106
    %v243 = vunpack.c.l.b16 %v107
    %v244 = vunpack.c.l.b16 %v108
    %v245 = vunpack.c.l.b16 %v109
    %v246 = vunpack.c.l.b16 %v110
    %v247 = vunpack.c.l.b16 %v111
    %v248 = vunpack.c.l.b16 %v112
    %v249 = vunpack.c.l.b16 %v113
    %v250 = vunpack.c.l.b16 %v114
    %v251 = vunpack.c.l.b16 %v115
    %v252 = vunpack.c.l.b16 %v116
    %v253 = vunpack.c.l.b16 %v117
    %v254 = vunpack.c.l.b16 %v118
    %v255 = vunpack.c.l.b16 %v119
    %v256 = vunpack.c.l.b16 %v120
    %v257 = vunpack.c.l.b16 %v121
    %v258 = vunpack.c.l.b16 %v122
    %v259 = vunpack.c.l.b16 %v123
    %v260 = vunpack.c.l.b16 %v124
    %v261 = vunpack.c.l.b16 %v125
    %v262 = vunpack.c.l.b16 %v126
    %v263 = vpack.c.b16 %v200, %v199
    %v264 = vpack.c.b16 %v202, %v201
    %v265 = vpack.c.b16 %v204, %v203
    %v266 = vpack.c.b16 %v206, %v205
    %v267 = vpack.c.b16 %v208, %v207
    %v268 = vpack.c.b16 %v210, %v209
    %v269 = vpack.c.b16 %v212, %v211
    %v270 = vpack.c.b16 %v214, %v213
    %v271 = vpack.c.b16 %v216, %v215
    %v272 = vpack.c.b16 %v218, %v217
    %v273 = vpack.c.b16 %v220, %v219
    %v274 = vpack.c.b16 %v222, %v221
    %v275 = vpack.c.b16 %v224, %v223
    %v276 = vpack.c.b16 %v226, %v225
    %v277 = vpack.c.b16 %v228, %v227
    %v278 = vpack.c.b16 %v230, %v229
    %v279 = vpack.c.b16 %v232, %v231
    %v280 = vpack.c.b16 %v234, %v233
    %v281 = vpack.c.b16 %v236, %v235
    %v282 = vpack.c.b16 %v238, %v237
    %v283 = vpack.c.b16 %v240, %v239
    %v284 = vpack.c.b16 %v242, %v241
    %v285 = vpack.c.b16 %v244, %v243
    %v286 = vpack.c.b16 %v246, %v245
    %v287 = vpack.c.b16 %v248, %v247
    %v288 = vpack.c.b16 %v250, %v249
    %v289 = vpack.c.b16 %v252, %v251
    %v290 = vpack.c.b16 %v254, %v253
    %v291 = vpack.c.b16 %v256, %v255
    %v292 = vpack.c.b16 %v258, %v257
    %v293 = vpack.c.b16 %v260, %v259
    %v294 = vpack.c.b16 %v262, %v261
    %v303 = vunpack.c.l.b16 %v127
    %v304 = vunpack.c.l.b16 %v128
    %v305 = vunpack.c.l.b16 %v129
    %v306 = vunpack.c.l.b16 %v130
    %v307 = vunpack.c.l.b16 %v131
    %v308 = vunpack.c.l.b16 %v132
    %v309 = vunpack.c.l.b16 %v133
    %v310 = vunpack.c.l.b16 %v134
    %v311 = vpack.c.b16 %v304, %v303
    %v312 = vpack.c.b16 %v306, %v305
    %v313 = vpack.c.b16 %v308, %v307
    %v314 = vpack.c.b16 %v310, %v309
    %vm319 = vcmask 523264
    %v321 = vsel %vm319, %v263, 0
    %v324 = vsel %vm319, %v264, 0
    %v327 = vsel %vm319, %v265, 0
    %v330 = vsel %vm319, %v266, 0
    %v333 = vsel %vm319, %v267, 0
    %v336 = vsel %vm319, %v268, 0
    %v339 = vsel %vm319, %v269, 0
    %v342 = vsel %vm319, %v270, 0
    %v345 = vsel %vm319, %v271, 0
    %v348 = vsel %vm319, %v272, 0
    %v351 = vsel %vm319, %v273, 0
    %v354 = vsel %vm319, %v274, 0
    %v357 = vsel %vm319, %v275, 0
    %v360 = vsel %vm319, %v276, 0
    %v363 = vsel %vm319, %v277, 0
    %v366 = vsel %vm319, %v278, 0
    %v369 = vsel %vm319, %v279, 0
    %v372 = vsel %vm319, %v280, 0
    %v375 = vsel %vm319, %v281, 0
    %v378 = vsel %vm319, %v282, 0
    %v381 = vsel %vm319, %v283, 0
    %v384 = vsel %vm319, %v284, 0
    %v387 = vsel %vm319, %v285, 0
    %v390 = vsel %vm319, %v286, 0
    %v393 = vsel %vm319, %v287, 0
    %v396 = vsel %vm319, %v288, 0
    %v399 = vsel %vm319, %v289, 0
    %v402 = vsel %vm319, %v290, 0
    %v405 = vsel %vm319, %v291, 0
    %v408 = vsel %vm319, %v292, 0
    %v411 = vsel %vm319, %v293, 0
    %v414 = vsel %vm319, %v294, 0
    %416 = vmatprep.subr.bf16.mxu0 0
    %417 = vmatpush1.bf16.msra.mxu0 %v311
    %418 = vmatprep.subr.bf16.mxu0 0
    %419 = vmatpush1.bf16.msra.mxu0 %v312
    %420 = vmatprep.subr.bf16.mxu0 0
    %421 = vmatpush1.bf16.msra.mxu0 %v313
    %422 = vmatprep.subr.bf16.mxu0 0
    %423 = vmatpush1.bf16.msra.mxu0 %v314
    %424 = vmatprep.subr.bf16.mxu0 0
    %425 = vmatpush1.bf16.msra.mxu0 0
    %426 = vmatprep.subr.bf16.mxu0 0
    %427 = vmatpush1.bf16.msra.mxu0 0
    %428 = vmatprep.subr.bf16.mxu0 0
    %429 = vmatpush1.bf16.msra.mxu0 0
    %430 = vmatprep.subr.bf16.mxu0 0
    %431 = vmatpush1.bf16.msra.mxu0 0
    %432 = vmatprep.subr.bf16.mxu0 0
    %433 = vmatpush1.bf16.msra.mxu0 0
    %434 = vmatprep.subr.bf16.mxu0 0
    %435 = vmatpush1.bf16.msra.mxu0 0
    %436 = vmatprep.subr.bf16.mxu0 0
    %437 = vmatpush1.bf16.msra.mxu0 0
    %438 = vmatprep.subr.bf16.mxu0 0
    %439 = vmatpush1.bf16.msra.mxu0 0
    %440 = vmatprep.subr.bf16.mxu0 0
    %441 = vmatpush1.bf16.msra.mxu0 0
    %442 = vmatprep.subr.bf16.mxu0 0
    %443 = vmatpush1.bf16.msra.mxu0 0
    %444 = vmatprep.subr.bf16.mxu0 0
    %445 = vmatpush1.bf16.msra.mxu0 0
    %446 = vmatprep.subr.bf16.mxu0 0
    %447 = vmatpush1.bf16.msra.mxu0 0
    %448 = vmatprep.mubr.bf16.mxu0 0
    %449 = vmatmul.mubr.bf16.gmra.mrb[0].mxu0 %v321
    %v450 = vpop.f32.mrb[0].mxu0
    %v451 = vadd.f32 0.0, %v450
    %v452 = vpop.f32.mrb[0].mxu0
    %v453 = vpop.f32.mrb[0].mxu0
    %v454 = vadd.f32 0.0, %v453
    %v455 = vpop.f32.mrb[0].mxu0
    %456 = vmatprep.mubr.bf16.mxu0 0
    %457 = vmatmul.mubr.bf16.gmra.mrb[0].mxu0 %v324
    %v458 = vpop.f32.mrb[0].mxu0
    %v459 = vadd.f32 0.0, %v458
    %v460 = vpop.f32.mrb[0].mxu0
    %v461 = vpop.f32.mrb[0].mxu0
    %v462 = vadd.f32 0.0, %v461
    %v463 = vpop.f32.mrb[0].mxu0
    %464 = vmatprep.mubr.bf16.mxu0 0
    %465 = vmatmul.mubr.bf16.gmra.mrb[0].mxu0 %v327
    %v466 = vpop.f32.mrb[0].mxu0
    %v467 = vadd.f32 0.0, %v466
    %v468 = vpop.f32.mrb[0].mxu0
    %v469 = vpop.f32.mrb[0].mxu0
    %v470 = vadd.f32 0.0, %v469
    %v471 = vpop.f32.mrb[0].mxu0
    %472 = vmatprep.mubr.bf16.mxu0 0
    %473 = vmatmul.mubr.bf16.gmra.mrb[0].mxu0 %v330
    %v474 = vpop.f32.mrb[0].mxu0
    %v475 = vadd.f32 0.0, %v474
    %v476 = vpop.f32.mrb[0].mxu0
    %v477 = vpop.f32.mrb[0].mxu0
    %v478 = vadd.f32 0.0, %v477
    %v479 = vpop.f32.mrb[0].mxu0
    %480 = vmatprep.mubr.bf16.mxu0 0
    %481 = vmatmul.mubr.bf16.gmra.mrb[0].mxu0 %v333
    %v482 = vpop.f32.mrb[0].mxu0
    %v483 = vadd.f32 0.0, %v482
    %v484 = vpop.f32.mrb[0].mxu0
    %v485 = vpop.f32.mrb[0].mxu0
    %v486 = vadd.f32 0.0, %v485
    %v487 = vpop.f32.mrb[0].mxu0
    %488 = vmatprep.mubr.bf16.mxu0 0
    %489 = vmatmul.mubr.bf16.gmra.mrb[0].mxu0 %v336
    %v490 = vpop.f32.mrb[0].mxu0
    %v491 = vadd.f32 0.0, %v490
    %v492 = vpop.f32.mrb[0].mxu0
    %v493 = vpop.f32.mrb[0].mxu0
    %v494 = vadd.f32 0.0, %v493
    %v495 = vpop.f32.mrb[0].mxu0
    %496 = vmatprep.mubr.bf16.mxu0 0
    %497 = vmatmul.mubr.bf16.gmra.mrb[0].mxu0 %v339
    %v498 = vpop.f32.mrb[0].mxu0
    %v499 = vadd.f32 0.0, %v498
    %v500 = vpop.f32.mrb[0].mxu0
    %v501 = vpop.f32.mrb[0].mxu0
    %v502 = vadd.f32 0.0, %v501
    %v503 = vpop.f32.mrb[0].mxu0
    %504 = vmatprep.mubr.bf16.mxu0 0
    %505 = vmatmul.mubr.bf16.gmra.mrb[0].mxu0 %v342
    %v506 = vpop.f32.mrb[0].mxu0
    %v507 = vadd.f32 0.0, %v506
    %v508 = vpop.f32.mrb[0].mxu0
    %v509 = vpop.f32.mrb[0].mxu0
    %v510 = vadd.f32 0.0, %v509
    %v511 = vpop.f32.mrb[0].mxu0
    %512 = vmatprep.mubr.bf16.mxu0 0
    %513 = vmatmul.mubr.bf16.gmra.mrb[0].mxu0 %v345
    %v514 = vpop.f32.mrb[0].mxu0
    %v515 = vadd.f32 0.0, %v514
    %v516 = vpop.f32.mrb[0].mxu0
    %v517 = vpop.f32.mrb[0].mxu0
    %v518 = vadd.f32 0.0, %v517
    %v519 = vpop.f32.mrb[0].mxu0
    %520 = vmatprep.mubr.bf16.mxu0 0
    %521 = vmatmul.mubr.bf16.gmra.mrb[0].mxu0 %v348
    %v522 = vpop.f32.mrb[0].mxu0
    %v523 = vadd.f32 0.0, %v522
    %v524 = vpop.f32.mrb[0].mxu0
    %v525 = vpop.f32.mrb[0].mxu0
    %v526 = vadd.f32 0.0, %v525
    %v527 = vpop.f32.mrb[0].mxu0
    %528 = vmatprep.mubr.bf16.mxu0 0
    %529 = vmatmul.mubr.bf16.gmra.mrb[0].mxu0 %v351
    %v530 = vpop.f32.mrb[0].mxu0
    %v531 = vadd.f32 0.0, %v530
    %v532 = vpop.f32.mrb[0].mxu0
    %v533 = vpop.f32.mrb[0].mxu0
    %v534 = vadd.f32 0.0, %v533
    %v535 = vpop.f32.mrb[0].mxu0
    %536 = vmatprep.mubr.bf16.mxu0 0
    %537 = vmatmul.mubr.bf16.gmra.mrb[0].mxu0 %v354
    %v538 = vpop.f32.mrb[0].mxu0
    %v539 = vadd.f32 0.0, %v538
    %v540 = vpop.f32.mrb[0].mxu0
    %v541 = vpop.f32.mrb[0].mxu0
    %v542 = vadd.f32 0.0, %v541
    %v543 = vpop.f32.mrb[0].mxu0
    %544 = vmatprep.mubr.bf16.mxu0 0
    %545 = vmatmul.mubr.bf16.gmra.mrb[0].mxu0 %v357
    %v546 = vpop.f32.mrb[0].mxu0
    %v547 = vadd.f32 0.0, %v546
    %v548 = vpop.f32.mrb[0].mxu0
    %v549 = vpop.f32.mrb[0].mxu0
    %v550 = vadd.f32 0.0, %v549
    %v551 = vpop.f32.mrb[0].mxu0
    %552 = vmatprep.mubr.bf16.mxu0 0
    %553 = vmatmul.mubr.bf16.gmra.mrb[0].mxu0 %v360
    %v554 = vpop.f32.mrb[0].mxu0
    %v555 = vadd.f32 0.0, %v554
    %v556 = vpop.f32.mrb[0].mxu0
    %v557 = vpop.f32.mrb[0].mxu0
    %v558 = vadd.f32 0.0, %v557
    %v559 = vpop.f32.mrb[0].mxu0
    %560 = vmatprep.mubr.bf16.mxu0 0
    %561 = vmatmul.mubr.bf16.gmra.mrb[0].mxu0 %v363
    %v562 = vpop.f32.mrb[0].mxu0
    %v563 = vadd.f32 0.0, %v562
    %v564 = vpop.f32.mrb[0].mxu0
    %v565 = vpop.f32.mrb[0].mxu0
    %v566 = vadd.f32 0.0, %v565
    %v567 = vpop.f32.mrb[0].mxu0
    %568 = vmatprep.mubr.bf16.mxu0 0
    %569 = vmatmul.mubr.bf16.gmra.mrb[0].mxu0 %v366
    %v570 = vpop.f32.mrb[0].mxu0
    %v571 = vadd.f32 0.0, %v570
    %v572 = vpop.f32.mrb[0].mxu0
    %v573 = vpop.f32.mrb[0].mxu0
    %v574 = vadd.f32 0.0, %v573
    %v575 = vpop.f32.mrb[0].mxu0
    %576 = vmatprep.mubr.bf16.mxu0 0
    %577 = vmatmul.mubr.bf16.gmra.mrb[0].mxu0 %v369
    %v578 = vpop.f32.mrb[0].mxu0
    %v579 = vadd.f32 0.0, %v578
    %v580 = vpop.f32.mrb[0].mxu0
    %v581 = vpop.f32.mrb[0].mxu0
    %v582 = vadd.f32 0.0, %v581
    %v583 = vpop.f32.mrb[0].mxu0
    %584 = vmatprep.mubr.bf16.mxu0 0
    %585 = vmatmul.mubr.bf16.gmra.mrb[0].mxu0 %v372
    %v586 = vpop.f32.mrb[0].mxu0
    %v587 = vadd.f32 0.0, %v586
    %v588 = vpop.f32.mrb[0].mxu0
    %v589 = vpop.f32.mrb[0].mxu0
    %v590 = vadd.f32 0.0, %v589
    %v591 = vpop.f32.mrb[0].mxu0
    %592 = vmatprep.mubr.bf16.mxu0 0
    %593 = vmatmul.mubr.bf16.gmra.mrb[0].mxu0 %v375
    %v594 = vpop.f32.mrb[0].mxu0
    %v595 = vadd.f32 0.0, %v594
    %v596 = vpop.f32.mrb[0].mxu0
    %v597 = vpop.f32.mrb[0].mxu0
    %v598 = vadd.f32 0.0, %v597
    %v599 = vpop.f32.mrb[0].mxu0
    %600 = vmatprep.mubr.bf16.mxu0 0
    %601 = vmatmul.mubr.bf16.gmra.mrb[0].mxu0 %v378
    %v602 = vpop.f32.mrb[0].mxu0
    %v603 = vadd.f32 0.0, %v602
    %v604 = vpop.f32.mrb[0].mxu0
    %v605 = vpop.f32.mrb[0].mxu0
    %v606 = vadd.f32 0.0, %v605
    %v607 = vpop.f32.mrb[0].mxu0
    %608 = vmatprep.mubr.bf16.mxu0 0
    %609 = vmatmul.mubr.bf16.gmra.mrb[0].mxu0 %v381
    %v610 = vpop.f32.mrb[0].mxu0
    %v611 = vadd.f32 0.0, %v610
    %v612 = vpop.f32.mrb[0].mxu0
    %v613 = vpop.f32.mrb[0].mxu0
    %v614 = vadd.f32 0.0, %v613
    %v615 = vpop.f32.mrb[0].mxu0
    %616 = vmatprep.mubr.bf16.mxu0 0
    %617 = vmatmul.mubr.bf16.gmra.mrb[0].mxu0 %v384
    %v618 = vpop.f32.mrb[0].mxu0
    %v619 = vadd.f32 0.0, %v618
    %v620 = vpop.f32.mrb[0].mxu0
    %v621 = vpop.f32.mrb[0].mxu0
    %v622 = vadd.f32 0.0, %v621
    %v623 = vpop.f32.mrb[0].mxu0
    %624 = vmatprep.mubr.bf16.mxu0 0
    %625 = vmatmul.mubr.bf16.gmra.mrb[0].mxu0 %v387
    %v626 = vpop.f32.mrb[0].mxu0
    %v627 = vadd.f32 0.0, %v626
    %v628 = vpop.f32.mrb[0].mxu0
    %v629 = vpop.f32.mrb[0].mxu0
    %v630 = vadd.f32 0.0, %v629
    %v631 = vpop.f32.mrb[0].mxu0
    %632 = vmatprep.mubr.bf16.mxu0 0
    %633 = vmatmul.mubr.bf16.gmra.mrb[0].mxu0 %v390
    %v634 = vpop.f32.mrb[0].mxu0
    %v635 = vadd.f32 0.0, %v634
    %v636 = vpop.f32.mrb[0].mxu0
    %v637 = vpop.f32.mrb[0].mxu0
    %v638 = vadd.f32 0.0, %v637
    %v639 = vpop.f32.mrb[0].mxu0
    %640 = vmatprep.mubr.bf16.mxu0 0
    %641 = vmatmul.mubr.bf16.gmra.mrb[0].mxu0 %v393
    %v642 = vpop.f32.mrb[0].mxu0
    %v643 = vadd.f32 0.0, %v642
    %v644 = vpop.f32.mrb[0].mxu0
    %v645 = vpop.f32.mrb[0].mxu0
    %v646 = vadd.f32 0.0, %v645
    %v647 = vpop.f32.mrb[0].mxu0
    %648 = vmatprep.mubr.bf16.mxu0 0
    %649 = vmatmul.mubr.bf16.gmra.mrb[0].mxu0 %v396
    %v650 = vpop.f32.mrb[0].mxu0
    %v651 = vadd.f32 0.0, %v650
    %v652 = vpop.f32.mrb[0].mxu0
    %v653 = vpop.f32.mrb[0].mxu0
    %v654 = vadd.f32 0.0, %v653
    %v655 = vpop.f32.mrb[0].mxu0
    %656 = vmatprep.mubr.bf16.mxu0 0
    %657 = vmatmul.mubr.bf16.gmra.mrb[0].mxu0 %v399
    %v658 = vpop.f32.mrb[0].mxu0
    %v659 = vadd.f32 0.0, %v658
    %v660 = vpop.f32.mrb[0].mxu0
    %v661 = vpop.f32.mrb[0].mxu0
    %v662 = vadd.f32 0.0, %v661
    %v663 = vpop.f32.mrb[0].mxu0
    %664 = vmatprep.mubr.bf16.mxu0 0
    %665 = vmatmul.mubr.bf16.gmra.mrb[0].mxu0 %v402
    %v666 = vpop.f32.mrb[0].mxu0
    %v667 = vadd.f32 0.0, %v666
    %v668 = vpop.f32.mrb[0].mxu0
    %v669 = vpop.f32.mrb[0].mxu0
    %v670 = vadd.f32 0.0, %v669
    %v671 = vpop.f32.mrb[0].mxu0
    %672 = vmatprep.mubr.bf16.mxu0 0
    %673 = vmatmul.mubr.bf16.gmra.mrb[0].mxu0 %v405
    %v674 = vpop.f32.mrb[0].mxu0
    %v675 = vadd.f32 0.0, %v674
    %v676 = vpop.f32.mrb[0].mxu0
    %v677 = vpop.f32.mrb[0].mxu0
    %v678 = vadd.f32 0.0, %v677
    %v679 = vpop.f32.mrb[0].mxu0
    %680 = vmatprep.mubr.bf16.mxu0 0
    %681 = vmatmul.mubr.bf16.gmra.mrb[0].mxu0 %v408
    %v682 = vpop.f32.mrb[0].mxu0
    %v683 = vadd.f32 0.0, %v682
    %v684 = vpop.f32.mrb[0].mxu0
    %v685 = vpop.f32.mrb[0].mxu0
    %v686 = vadd.f32 0.0, %v685
    %v687 = vpop.f32.mrb[0].mxu0
    %688 = vmatprep.mubr.bf16.mxu0 0
    %689 = vmatmul.mubr.bf16.gmra.mrb[0].mxu0 %v411
    %v690 = vpop.f32.mrb[0].mxu0
    %v691 = vadd.f32 0.0, %v690
    %v692 = vpop.f32.mrb[0].mxu0
    %v693 = vpop.f32.mrb[0].mxu0
    %v694 = vadd.f32 0.0, %v693
    %v695 = vpop.f32.mrb[0].mxu0
    %696 = vmatprep.mubr.bf16.mxu0 0
    %697 = vmatmul.mubr.bf16.gmra.mrb[0].mxu0 %v414
    %v698 = vpop.f32.mrb[0].mxu0
    %v699 = vadd.f32 0.0, %v698
    %v700 = vpop.f32.mrb[0].mxu0
    %v701 = vpop.f32.mrb[0].mxu0
    %v702 = vadd.f32 0.0, %v701
    %v703 = vpop.f32.mrb[0].mxu0
    %704 = vdwg.mxu0
    %v705 = vld [vmem:[#allocation5] sm:$0xff]
    %v706 = vld [vmem:[#allocation5 + $0x8] sm:$0xff]
    %v707 = vld [vmem:[%s3] sm:$0x1]
    %v710 = vcombine.high %v705, %v705
    %v712 = vunpack.c.l.s4 1966171168
    %v713 = vunpack.c.0.s8 %v712
    %v714 = vlaneseq
    %v715 = vshrl.u32 %v714, 7
    %v716 = vsub.s32 %v713, %v715
    %v717 = vrot.slane %v705, %v716
    %v719 = vunpack.c.l.s4 1966171168
    %v720 = vunpack.c.0.s8 %v719
    %v721 = vlaneseq
    %v722 = vshrl.u32 %v721, 7
    %v723 = vsub.s32 %v720, %v722
    %v724 = vrot.slane %v710, %v723
    %v725 = vcombine.high %v717, %v717
    %v726 = vcombine.high %v724, %v724
    %v728 = vunpack.c.l.s4 1966171168
    %v729 = vunpack.c.0.s8 %v728
    %v730 = vlaneseq
    %v731 = vshrl.u32 %v730, 7
    %v732 = vsub.s32 %v729, %v731
    %v733 = vrot.slane %v717, %v732
    %v735 = vunpack.c.l.s4 1966171168
    %v736 = vunpack.c.0.s8 %v735
    %v737 = vlaneseq
    %v738 = vshrl.u32 %v737, 7
    %v739 = vsub.s32 %v736, %v738
    %v740 = vrot.slane %v724, %v739
    %v742 = vunpack.c.l.s4 1966171168
    %v743 = vunpack.c.0.s8 %v742
    %v744 = vlaneseq
    %v745 = vshrl.u32 %v744, 7
    %v746 = vsub.s32 %v743, %v745
    %v747 = vrot.slane %v725, %v746
    %v749 = vunpack.c.l.s4 1966171168
    %v750 = vunpack.c.0.s8 %v749
    %v751 = vlaneseq
    %v752 = vshrl.u32 %v751, 7
    %v753 = vsub.s32 %v750, %v752
    %v754 = vrot.slane %v726, %v753
    %v755 = vcombine.high %v733, %v733
    %v756 = vcombine.high %v740, %v740
    %v757 = vcombine.high %v747, %v747
    %v758 = vcombine.high %v754, %v754
    %v759 = vcombine.high %v706, %v706
    %v761 = vunpack.c.l.s4 1966171168
    %v762 = vunpack.c.0.s8 %v761
    %v763 = vlaneseq
    %v764 = vshrl.u32 %v763, 7
    %v765 = vsub.s32 %v762, %v764
    %v766 = vrot.slane %v706, %v765
    %v768 = vunpack.c.l.s4 1966171168
    %v769 = vunpack.c.0.s8 %v768
    %v770 = vlaneseq
    %v771 = vshrl.u32 %v770, 7
    %v772 = vsub.s32 %v769, %v771
    %v773 = vrot.slane %v759, %v772
    %v774 = vcombine.high %v766, %v766
    %v775 = vcombine.high %v773, %v773
    %v777 = vunpack.c.l.s4 1966171168
    %v778 = vunpack.c.0.s8 %v777
    %v779 = vlaneseq
    %v780 = vshrl.u32 %v779, 7
    %v781 = vsub.s32 %v778, %v780
    %v782 = vrot.slane %v766, %v781
    %v784 = vunpack.c.l.s4 1966171168
    %v785 = vunpack.c.0.s8 %v784
    %v786 = vlaneseq
    %v787 = vshrl.u32 %v786, 7
    %v788 = vsub.s32 %v785, %v787
    %v789 = vrot.slane %v773, %v788
    %v791 = vunpack.c.l.s4 1966171168
    %v792 = vunpack.c.0.s8 %v791
    %v793 = vlaneseq
    %v794 = vshrl.u32 %v793, 7
    %v795 = vsub.s32 %v792, %v794
    %v796 = vrot.slane %v774, %v795
    %v798 = vunpack.c.l.s4 1966171168
    %v799 = vunpack.c.0.s8 %v798
    %v800 = vlaneseq
    %v801 = vshrl.u32 %v800, 7
    %v802 = vsub.s32 %v799, %v801
    %v803 = vrot.slane %v775, %v802
    %v804 = vcombine.high %v782, %v782
    %v805 = vcombine.high %v789, %v789
    %v806 = vcombine.high %v796, %v796
    %v807 = vcombine.high %v803, %v803
    %v808 = vlaneseq
    %v809 = vshrl.u32 %v808, 7
    %v810 = vsub.s32 0, %v809
    %v811 = vrot.slane %v733, %v810
    %v812 = vlaneseq
    %v813 = vshrl.u32 %v812, 7
    %v814 = vsub.s32 0, %v813
    %v815 = vrot.slane %v747, %v814
    %v816 = vlaneseq
    %v817 = vshrl.u32 %v816, 7
    %v818 = vsub.s32 0, %v817
    %v819 = vrot.slane %v755, %v818
    %v820 = vlaneseq
    %v821 = vshrl.u32 %v820, 7
    %v822 = vsub.s32 0, %v821
    %v823 = vrot.slane %v757, %v822
    %v824 = vlaneseq
    %v825 = vshrl.u32 %v824, 7
    %v826 = vsub.s32 0, %v825
    %v827 = vrot.slane %v740, %v826
    %v828 = vlaneseq
    %v829 = vshrl.u32 %v828, 7
    %v830 = vsub.s32 0, %v829
    %v831 = vrot.slane %v754, %v830
    %v832 = vlaneseq
    %v833 = vshrl.u32 %v832, 7
    %v834 = vsub.s32 0, %v833
    %v835 = vrot.slane %v756, %v834
    %v836 = vlaneseq
    %v837 = vshrl.u32 %v836, 7
    %v838 = vsub.s32 0, %v837
    %v839 = vrot.slane %v758, %v838
    %v840 = vlaneseq
    %v841 = vshrl.u32 %v840, 7
    %v842 = vsub.s32 0, %v841
    %v843 = vrot.slane %v782, %v842
    %v844 = vlaneseq
    %v845 = vshrl.u32 %v844, 7
    %v846 = vsub.s32 0, %v845
    %v847 = vrot.slane %v796, %v846
    %v848 = vlaneseq
    %v849 = vshrl.u32 %v848, 7
    %v850 = vsub.s32 0, %v849
    %v851 = vrot.slane %v804, %v850
    %v852 = vlaneseq
    %v853 = vshrl.u32 %v852, 7
    %v854 = vsub.s32 0, %v853
    %v855 = vrot.slane %v806, %v854
    %v856 = vlaneseq
    %v857 = vshrl.u32 %v856, 7
    %v858 = vsub.s32 0, %v857
    %v859 = vrot.slane %v789, %v858
    %v860 = vlaneseq
    %v861 = vshrl.u32 %v860, 7
    %v862 = vsub.s32 0, %v861
    %v863 = vrot.slane %v803, %v862
    %v864 = vlaneseq
    %v865 = vshrl.u32 %v864, 7
    %v866 = vsub.s32 0, %v865
    %v867 = vrot.slane %v805, %v866
    %v868 = vlaneseq
    %v869 = vshrl.u32 %v868, 7
    %v870 = vsub.s32 0, %v869
    %v871 = vrot.slane %v807, %v870
    %v888 = vadd.f32 %v451, %v811
    %v889 = vadd.f32 %v454, %v811
    %v890 = vadd.f32 %v459, %v811
    %v891 = vadd.f32 %v462, %v811
    %v892 = vadd.f32 %v467, %v815
    %v893 = vadd.f32 %v470, %v815
    %v894 = vadd.f32 %v475, %v815
    %v895 = vadd.f32 %v478, %v815
    %v896 = vadd.f32 %v483, %v819
    %v897 = vadd.f32 %v486, %v819
    %v898 = vadd.f32 %v491, %v819
    %v899 = vadd.f32 %v494, %v819
    %v900 = vadd.f32 %v499, %v823
    %v901 = vadd.f32 %v502, %v823
    %v902 = vadd.f32 %v507, %v823
    %v903 = vadd.f32 %v510, %v823
    %v904 = vadd.f32 %v515, %v827
    %v905 = vadd.f32 %v518, %v827
    %v906 = vadd.f32 %v523, %v827
    %v907 = vadd.f32 %v526, %v827
    %v908 = vadd.f32 %v531, %v831
    %v909 = vadd.f32 %v534, %v831
    %v910 = vadd.f32 %v539, %v831
    %v911 = vadd.f32 %v542, %v831
    %v912 = vadd.f32 %v547, %v835
    %v913 = vadd.f32 %v550, %v835
    %v914 = vadd.f32 %v555, %v835
    %v915 = vadd.f32 %v558, %v835
    %v916 = vadd.f32 %v563, %v839
    %v917 = vadd.f32 %v566, %v839
    %v918 = vadd.f32 %v571, %v839
    %v919 = vadd.f32 %v574, %v839
    %v920 = vadd.f32 %v579, %v843
    %v921 = vadd.f32 %v582, %v843
    %v922 = vadd.f32 %v587, %v843
    %v923 = vadd.f32 %v590, %v843
    %v924 = vadd.f32 %v595, %v847
    %v925 = vadd.f32 %v598, %v847
    %v926 = vadd.f32 %v603, %v847
    %v927 = vadd.f32 %v606, %v847
    %v928 = vadd.f32 %v611, %v851
    %v929 = vadd.f32 %v614, %v851
    %v930 = vadd.f32 %v619, %v851
    %v931 = vadd.f32 %v622, %v851
    %v932 = vadd.f32 %v627, %v855
    %v933 = vadd.f32 %v630, %v855
    %v934 = vadd.f32 %v635, %v855
    %v935 = vadd.f32 %v638, %v855
    %v936 = vadd.f32 %v643, %v859
    %v937 = vadd.f32 %v646, %v859
    %v938 = vadd.f32 %v651, %v859
    %v939 = vadd.f32 %v654, %v859
    %v940 = vadd.f32 %v659, %v863
    %v941 = vadd.f32 %v662, %v863
    %v942 = vadd.f32 %v667, %v863
    %v943 = vadd.f32 %v670, %v863
    %v944 = vadd.f32 %v675, %v867
    %v945 = vadd.f32 %v678, %v867
    %v946 = vadd.f32 %v683, %v867
    %v947 = vadd.f32 %v686, %v867
    %v948 = vadd.f32 %v691, %v871
    %v949 = vadd.f32 %v694, %v871
    %v950 = vadd.f32 %v699, %v871
    %v951 = vadd.f32 %v702, %v871
    %v952 = vmax.f32 %v888, 0.0
    %v953 = vmax.f32 %v889, 0.0
    %v954 = vmax.f32 %v890, 0.0
    %v955 = vmax.f32 %v891, 0.0
    %v956 = vmax.f32 %v892, 0.0
    %v957 = vmax.f32 %v893, 0.0
    %v958 = vmax.f32 %v894, 0.0
    %v959 = vmax.f32 %v895, 0.0
    %v960 = vmax.f32 %v896, 0.0
    %v961 = vmax.f32 %v897, 0.0
    %v962 = vmax.f32 %v898, 0.0
    %v963 = vmax.f32 %v899, 0.0
    %v964 = vmax.f32 %v900, 0.0
    %v965 = vmax.f32 %v901, 0.0
    %v966 = vmax.f32 %v902, 0.0
    %v967 = vmax.f32 %v903, 0.0
    %v968 = vmax.f32 %v904, 0.0
    %v969 = vmax.f32 %v905, 0.0
    %v970 = vmax.f32 %v906, 0.0
    %v971 = vmax.f32 %v907, 0.0
    %v972 = vmax.f32 %v908, 0.0
    %v973 = vmax.f32 %v909, 0.0
    %v974 = vmax.f32 %v910, 0.0
    %v975 = vmax.f32 %v911, 0.0
    %v976 = vmax.f32 %v912, 0.0
    %v977 = vmax.f32 %v913, 0.0
    %v978 = vmax.f32 %v914, 0.0
    %v979 = vmax.f32 %v915, 0.0
    %v980 = vmax.f32 %v916, 0.0
    %v981 = vmax.f32 %v917, 0.0
    %v982 = vmax.f32 %v918, 0.0
    %v983 = vmax.f32 %v919, 0.0
    %v984 = vmax.f32 %v920, 0.0
    %v985 = vmax.f32 %v921, 0.0
    %v986 = vmax.f32 %v922, 0.0
    %v987 = vmax.f32 %v923, 0.0
    %v988 = vmax.f32 %v924, 0.0
    %v989 = vmax.f32 %v925, 0.0
    %v990 = vmax.f32 %v926, 0.0
    %v991 = vmax.f32 %v927, 0.0
    %v992 = vmax.f32 %v928, 0.0
    %v993 = vmax.f32 %v929, 0.0
    %v994 = vmax.f32 %v930, 0.0
    %v995 = vmax.f32 %v931, 0.0
    %v996 = vmax.f32 %v932, 0.0
    %v997 = vmax.f32 %v933, 0.0
    %v998 = vmax.f32 %v934, 0.0
    %v999 = vmax.f32 %v935, 0.0
    %v1000 = vmax.f32 %v936, 0.0
    %v1001 = vmax.f32 %v937, 0.0
    %v1002 = vmax.f32 %v938, 0.0
    %v1003 = vmax.f32 %v939, 0.0
    %v1004 = vmax.f32 %v940, 0.0
    %v1005 = vmax.f32 %v941, 0.0
    %v1006 = vmax.f32 %v942, 0.0
    %v1007 = vmax.f32 %v943, 0.0
    %v1008 = vmax.f32 %v944, 0.0
    %v1009 = vmax.f32 %v945, 0.0
    %v1010 = vmax.f32 %v946, 0.0
    %v1011 = vmax.f32 %v947, 0.0
    %v1012 = vmax.f32 %v948, 0.0
    %v1013 = vmax.f32 %v949, 0.0
    %v1014 = vmax.f32 %v950, 0.0
    %v1015 = vmax.f32 %v951, 0.0
    %v1017 = vlaneseq
    %v1018 = vshrl.u32 %v1017, 7
    %v1019 = vsub.s32 0, %v1018
    %v1020 = vrot.slane %v707, %v1019
    %v1022 = vmul.f32 %v952, %v1020
    %v1023 = vmul.f32 %v953, %v1020
    %v1024 = vmul.f32 %v954, %v1020
    %v1025 = vmul.f32 %v955, %v1020
    %v1026 = vmul.f32 %v956, %v1020
    %v1027 = vmul.f32 %v957, %v1020
    %v1028 = vmul.f32 %v958, %v1020
    %v1029 = vmul.f32 %v959, %v1020
    %v1030 = vmul.f32 %v960, %v1020
    %v1031 = vmul.f32 %v961, %v1020
    %v1032 = vmul.f32 %v962, %v1020
    %v1033 = vmul.f32 %v963, %v1020
    %v1034 = vmul.f32 %v964, %v1020
    %v1035 = vmul.f32 %v965, %v1020
    %v1036 = vmul.f32 %v966, %v1020
    %v1037 = vmul.f32 %v967, %v1020
    %v1038 = vmul.f32 %v968, %v1020
    %v1039 = vmul.f32 %v969, %v1020
    %v1040 = vmul.f32 %v970, %v1020
    %v1041 = vmul.f32 %v971, %v1020
    %v1042 = vmul.f32 %v972, %v1020
    %v1043 = vmul.f32 %v973, %v1020
    %v1044 = vmul.f32 %v974, %v1020
    %v1045 = vmul.f32 %v975, %v1020
    %v1046 = vmul.f32 %v976, %v1020
    %v1047 = vmul.f32 %v977, %v1020
    %v1048 = vmul.f32 %v978, %v1020
    %v1049 = vmul.f32 %v979, %v1020
    %v1050 = vmul.f32 %v980, %v1020
    %v1051 = vmul.f32 %v981, %v1020
    %v1052 = vmul.f32 %v982, %v1020
    %v1053 = vmul.f32 %v983, %v1020
    %v1054 = vmul.f32 %v984, %v1020
    %v1055 = vmul.f32 %v985, %v1020
    %v1056 = vmul.f32 %v986, %v1020
    %v1057 = vmul.f32 %v987, %v1020
    %v1058 = vmul.f32 %v988, %v1020
    %v1059 = vmul.f32 %v989, %v1020
    %v1060 = vmul.f32 %v990, %v1020
    %v1061 = vmul.f32 %v991, %v1020
    %v1062 = vmul.f32 %v992, %v1020
    %v1063 = vmul.f32 %v993, %v1020
    %v1064 = vmul.f32 %v994, %v1020
    %v1065 = vmul.f32 %v995, %v1020
    %v1066 = vmul.f32 %v996, %v1020
    %v1067 = vmul.f32 %v997, %v1020
    %v1068 = vmul.f32 %v998, %v1020
    %v1069 = vmul.f32 %v999, %v1020
    %v1070 = vmul.f32 %v1000, %v1020
    %v1071 = vmul.f32 %v1001, %v1020
    %v1072 = vmul.f32 %v1002, %v1020
    %v1073 = vmul.f32 %v1003, %v1020
    %v1074 = vmul.f32 %v1004, %v1020
    %v1075 = vmul.f32 %v1005, %v1020
    %v1076 = vmul.f32 %v1006, %v1020
    %v1077 = vmul.f32 %v1007, %v1020
    %v1078 = vmul.f32 %v1008, %v1020
    %v1079 = vmul.f32 %v1009, %v1020
    %v1080 = vmul.f32 %v1010, %v1020
    %v1081 = vmul.f32 %v1011, %v1020
    %v1082 = vmul.f32 %v1012, %v1020
    %v1083 = vmul.f32 %v1013, %v1020
    %v1084 = vmul.f32 %v1014, %v1020
    %v1085 = vmul.f32 %v1015, %v1020
    %1086 = vadd.xlane.f32.xlu0 %v1022
    %v1087 = vpop.xlane.xlu0 %1086
    %1088 = vadd.xlane.f32.xlu0 %v1023
    %v1089 = vpop.xlane.xlu0 %1088
    %1090 = vadd.xlane.f32.xlu0 %v1024
    %v1091 = vpop.xlane.xlu0 %1090
    %1092 = vadd.xlane.f32.xlu0 %v1025
    %v1093 = vpop.xlane.xlu0 %1092
    %1094 = vadd.xlane.f32.xlu0 %v1026
    %v1095 = vpop.xlane.xlu0 %1094
    %1096 = vadd.xlane.f32.xlu0 %v1027
    %v1097 = vpop.xlane.xlu0 %1096
    %1098 = vadd.xlane.f32.xlu0 %v1028
    %v1099 = vpop.xlane.xlu0 %1098
    %1100 = vadd.xlane.f32.xlu0 %v1029
    %v1101 = vpop.xlane.xlu0 %1100
    %1102 = vadd.xlane.f32.xlu0 %v1030
    %v1103 = vpop.xlane.xlu0 %1102
    %1104 = vadd.xlane.f32.xlu0 %v1031
    %v1105 = vpop.xlane.xlu0 %1104
    %1106 = vadd.xlane.f32.xlu0 %v1032
    %v1107 = vpop.xlane.xlu0 %1106
    %1108 = vadd.xlane.f32.xlu0 %v1033
    %v1109 = vpop.xlane.xlu0 %1108
    %1110 = vadd.xlane.f32.xlu0 %v1034
    %v1111 = vpop.xlane.xlu0 %1110
    %1112 = vadd.xlane.f32.xlu0 %v1035
    %v1113 = vpop.xlane.xlu0 %1112
    %1114 = vadd.xlane.f32.xlu0 %v1036
    %v1115 = vpop.xlane.xlu0 %1114
    %1116 = vadd.xlane.f32.xlu0 %v1037
    %v1117 = vpop.xlane.xlu0 %1116
    %1118 = vadd.xlane.f32.xlu0 %v1038
    %v1119 = vpop.xlane.xlu0 %1118
    %1120 = vadd.xlane.f32.xlu0 %v1039
    %v1121 = vpop.xlane.xlu0 %1120
    %1122 = vadd.xlane.f32.xlu0 %v1040
    %v1123 = vpop.xlane.xlu0 %1122
    %1124 = vadd.xlane.f32.xlu0 %v1041
    %v1125 = vpop.xlane.xlu0 %1124
    %1126 = vadd.xlane.f32.xlu0 %v1042
    %v1127 = vpop.xlane.xlu0 %1126
    %1128 = vadd.xlane.f32.xlu0 %v1043
    %v1129 = vpop.xlane.xlu0 %1128
    %1130 = vadd.xlane.f32.xlu0 %v1044
    %v1131 = vpop.xlane.xlu0 %1130
    %1132 = vadd.xlane.f32.xlu0 %v1045
    %v1133 = vpop.xlane.xlu0 %1132
    %1134 = vadd.xlane.f32.xlu0 %v1046
    %v1135 = vpop.xlane.xlu0 %1134
    %1136 = vadd.xlane.f32.xlu0 %v1047
    %v1137 = vpop.xlane.xlu0 %1136
    %1138 = vadd.xlane.f32.xlu0 %v1048
    %v1139 = vpop.xlane.xlu0 %1138
    %1140 = vadd.xlane.f32.xlu0 %v1049
    %v1141 = vpop.xlane.xlu0 %1140
    %1142 = vadd.xlane.f32.xlu0 %v1050
    %v1143 = vpop.xlane.xlu0 %1142
    %1144 = vadd.xlane.f32.xlu0 %v1051
    %v1145 = vpop.xlane.xlu0 %1144
    %1146 = vadd.xlane.f32.xlu0 %v1052
    %v1147 = vpop.xlane.xlu0 %1146
    %1148 = vadd.xlane.f32.xlu0 %v1053
    %v1149 = vpop.xlane.xlu0 %1148
    %1150 = vadd.xlane.f32.xlu0 %v1054
    %v1151 = vpop.xlane.xlu0 %1150
    %1152 = vadd.xlane.f32.xlu0 %v1055
    %v1153 = vpop.xlane.xlu0 %1152
    %1154 = vadd.xlane.f32.xlu0 %v1056
    %v1155 = vpop.xlane.xlu0 %1154
    %1156 = vadd.xlane.f32.xlu0 %v1057
    %v1157 = vpop.xlane.xlu0 %1156
    %1158 = vadd.xlane.f32.xlu0 %v1058
    %v1159 = vpop.xlane.xlu0 %1158
    %1160 = vadd.xlane.f32.xlu0 %v1059
    %v1161 = vpop.xlane.xlu0 %1160
    %1162 = vadd.xlane.f32.xlu0 %v1060
    %v1163 = vpop.xlane.xlu0 %1162
    %1164 = vadd.xlane.f32.xlu0 %v1061
    %v1165 = vpop.xlane.xlu0 %1164
    %1166 = vadd.xlane.f32.xlu0 %v1062
    %v1167 = vpop.xlane.xlu0 %1166
    %1168 = vadd.xlane.f32.xlu0 %v1063
    %v1169 = vpop.xlane.xlu0 %1168
    %1170 = vadd.xlane.f32.xlu0 %v1064
    %v1171 = vpop.xlane.xlu0 %1170
    %1172 = vadd.xlane.f32.xlu0 %v1065
    %v1173 = vpop.xlane.xlu0 %1172
    %1174 = vadd.xlane.f32.xlu0 %v1066
    %v1175 = vpop.xlane.xlu0 %1174
    %1176 = vadd.xlane.f32.xlu0 %v1067
    %v1177 = vpop.xlane.xlu0 %1176
    %1178 = vadd.xlane.f32.xlu0 %v1068
    %v1179 = vpop.xlane.xlu0 %1178
    %1180 = vadd.xlane.f32.xlu0 %v1069
    %v1181 = vpop.xlane.xlu0 %1180
    %1182 = vadd.xlane.f32.xlu0 %v1070
    %v1183 = vpop.xlane.xlu0 %1182
    %1184 = vadd.xlane.f32.xlu0 %v1071
    %v1185 = vpop.xlane.xlu0 %1184
    %1186 = vadd.xlane.f32.xlu0 %v1072
    %v1187 = vpop.xlane.xlu0 %1186
    %1188 = vadd.xlane.f32.xlu0 %v1073
    %v1189 = vpop.xlane.xlu0 %1188
    %1190 = vadd.xlane.f32.xlu0 %v1074
    %v1191 = vpop.xlane.xlu0 %1190
    %1192 = vadd.xlane.f32.xlu0 %v1075
    %v1193 = vpop.xlane.xlu0 %1192
    %1194 = vadd.xlane.f32.xlu0 %v1076
    %v1195 = vpop.xlane.xlu0 %1194
    %1196 = vadd.xlane.f32.xlu0 %v1077
    %v1197 = vpop.xlane.xlu0 %1196
    %1198 = vadd.xlane.f32.xlu0 %v1078
    %v1199 = vpop.xlane.xlu0 %1198
    %1200 = vadd.xlane.f32.xlu0 %v1079
    %v1201 = vpop.xlane.xlu0 %1200
    %1202 = vadd.xlane.f32.xlu0 %v1080
    %v1203 = vpop.xlane.xlu0 %1202
    %1204 = vadd.xlane.f32.xlu0 %v1081
    %v1205 = vpop.xlane.xlu0 %1204
    %1206 = vadd.xlane.f32.xlu0 %v1082
    %v1207 = vpop.xlane.xlu0 %1206
    %1208 = vadd.xlane.f32.xlu0 %v1083
    %v1209 = vpop.xlane.xlu0 %1208
    %1210 = vadd.xlane.f32.xlu0 %v1084
    %v1211 = vpop.xlane.xlu0 %1210
    %1212 = vadd.xlane.f32.xlu0 %v1085
    %v1213 = vpop.xlane.xlu0 %1212
    %v1214 = vlaneseq
    %v1215 = vand.u32 %v1214, 127
    %vm1216 = vcmp.lt.s32.totalorder %v1215, 25
    %v1281 = vlaneseq
    %v1282 = vshrl.u32 %v1281, 7
    %v1283 = vsub.s32 %v1215, %v1282
    %v1284 = vrot.slane %v1087, %v1283
    %v1285 = vadd.s32 %v1215, 4294967288
    %v1286 = vlaneseq
    %v1287 = vshrl.u32 %v1286, 7
    %v1288 = vsub.s32 %v1285, %v1287
    %v1289 = vrot.slane %v1089, %v1288
    %vm1290 = vcmask 130112
    %v1291 = vsel %vm1290, %v1289, %v1284
    %v1292 = vadd.s32 %v1215, 4294967280
    %v1293 = vlaneseq
    %v1294 = vshrl.u32 %v1293, 7
    %v1295 = vsub.s32 %v1292, %v1294
    %v1296 = vrot.slane %v1091, %v1295
    %vm1297 = vcmask 195712
    %v1298 = vsel %vm1297, %v1296, %v1291
    %v1299 = vadd.s32 %v1215, 4294967272
    %v1300 = vlaneseq
    %v1301 = vshrl.u32 %v1300, 7
    %v1302 = vsub.s32 %v1299, %v1301
    %v1303 = vrot.slane %v1093, %v1302
    %vm1304 = vcmask 261312
    %v1305 = vsel %vm1304, %v1303, %v1298
    %v1306 = vlaneseq
    %v1307 = vshrl.u32 %v1306, 7
    %v1308 = vsub.s32 %v1215, %v1307
    %v1309 = vrot.slane %v1095, %v1308
    %v1310 = vlaneseq
    %v1311 = vshrl.u32 %v1310, 7
    %v1312 = vsub.s32 %v1285, %v1311
    %v1313 = vrot.slane %v1097, %v1312
    %v1314 = vsel %vm1290, %v1313, %v1309
    %v1315 = vlaneseq
    %v1316 = vshrl.u32 %v1315, 7
    %v1317 = vsub.s32 %v1292, %v1316
    %v1318 = vrot.slane %v1099, %v1317
    %v1319 = vsel %vm1297, %v1318, %v1314
    %v1320 = vlaneseq
    %v1321 = vshrl.u32 %v1320, 7
    %v1322 = vsub.s32 %v1299, %v1321
    %v1323 = vrot.slane %v1101, %v1322
    %v1324 = vsel %vm1304, %v1323, %v1319
    %v1325 = vlaneseq
    %v1326 = vshrl.u32 %v1325, 7
    %v1327 = vsub.s32 %v1215, %v1326
    %v1328 = vrot.slane %v1103, %v1327
    %v1329 = vlaneseq
    %v1330 = vshrl.u32 %v1329, 7
    %v1331 = vsub.s32 %v1285, %v1330
    %v1332 = vrot.slane %v1105, %v1331
    %v1333 = vsel %vm1290, %v1332, %v1328
    %v1334 = vlaneseq
    %v1335 = vshrl.u32 %v1334, 7
    %v1336 = vsub.s32 %v1292, %v1335
    %v1337 = vrot.slane %v1107, %v1336
    %v1338 = vsel %vm1297, %v1337, %v1333
    %v1339 = vlaneseq
    %v1340 = vshrl.u32 %v1339, 7
    %v1341 = vsub.s32 %v1299, %v1340
    %v1342 = vrot.slane %v1109, %v1341
    %v1343 = vsel %vm1304, %v1342, %v1338
    %v1344 = vlaneseq
    %v1345 = vshrl.u32 %v1344, 7
    %v1346 = vsub.s32 %v1215, %v1345
    %v1347 = vrot.slane %v1111, %v1346
    %v1348 = vlaneseq
    %v1349 = vshrl.u32 %v1348, 7
    %v1350 = vsub.s32 %v1285, %v1349
    %v1351 = vrot.slane %v1113, %v1350
    %v1352 = vsel %vm1290, %v1351, %v1347
    %v1353 = vlaneseq
    %v1354 = vshrl.u32 %v1353, 7
    %v1355 = vsub.s32 %v1292, %v1354
    %v1356 = vrot.slane %v1115, %v1355
    %v1357 = vsel %vm1297, %v1356, %v1352
    %v1358 = vlaneseq
    %v1359 = vshrl.u32 %v1358, 7
    %v1360 = vsub.s32 %v1299, %v1359
    %v1361 = vrot.slane %v1117, %v1360
    %v1362 = vsel %vm1304, %v1361, %v1357
    %v1363 = vlaneseq
    %v1364 = vshrl.u32 %v1363, 7
    %v1365 = vsub.s32 %v1215, %v1364
    %v1366 = vrot.slane %v1119, %v1365
    %v1367 = vlaneseq
    %v1368 = vshrl.u32 %v1367, 7
    %v1369 = vsub.s32 %v1285, %v1368
    %v1370 = vrot.slane %v1121, %v1369
    %v1371 = vsel %vm1290, %v1370, %v1366
    %v1372 = vlaneseq
    %v1373 = vshrl.u32 %v1372, 7
    %v1374 = vsub.s32 %v1292, %v1373
    %v1375 = vrot.slane %v1123, %v1374
    %v1376 = vsel %vm1297, %v1375, %v1371
    %v1377 = vlaneseq
    %v1378 = vshrl.u32 %v1377, 7
    %v1379 = vsub.s32 %v1299, %v1378
    %v1380 = vrot.slane %v1125, %v1379
    %v1381 = vsel %vm1304, %v1380, %v1376
    %v1382 = vlaneseq
    %v1383 = vshrl.u32 %v1382, 7
    %v1384 = vsub.s32 %v1215, %v1383
    %v1385 = vrot.slane %v1127, %v1384
    %v1386 = vlaneseq
    %v1387 = vshrl.u32 %v1386, 7
    %v1388 = vsub.s32 %v1285, %v1387
    %v1389 = vrot.slane %v1129, %v1388
    %v1390 = vsel %vm1290, %v1389, %v1385
    %v1391 = vlaneseq
    %v1392 = vshrl.u32 %v1391, 7
    %v1393 = vsub.s32 %v1292, %v1392
    %v1394 = vrot.slane %v1131, %v1393
    %v1395 = vsel %vm1297, %v1394, %v1390
    %v1396 = vlaneseq
    %v1397 = vshrl.u32 %v1396, 7
    %v1398 = vsub.s32 %v1299, %v1397
    %v1399 = vrot.slane %v1133, %v1398
    %v1400 = vsel %vm1304, %v1399, %v1395
    %v1401 = vlaneseq
    %v1402 = vshrl.u32 %v1401, 7
    %v1403 = vsub.s32 %v1215, %v1402
    %v1404 = vrot.slane %v1135, %v1403
    %v1405 = vlaneseq
    %v1406 = vshrl.u32 %v1405, 7
    %v1407 = vsub.s32 %v1285, %v1406
    %v1408 = vrot.slane %v1137, %v1407
    %v1409 = vsel %vm1290, %v1408, %v1404
    %v1410 = vlaneseq
    %v1411 = vshrl.u32 %v1410, 7
    %v1412 = vsub.s32 %v1292, %v1411
    %v1413 = vrot.slane %v1139, %v1412
    %v1414 = vsel %vm1297, %v1413, %v1409
    %v1415 = vlaneseq
    %v1416 = vshrl.u32 %v1415, 7
    %v1417 = vsub.s32 %v1299, %v1416
    %v1418 = vrot.slane %v1141, %v1417
    %v1419 = vsel %vm1304, %v1418, %v1414
    %v1420 = vlaneseq
    %v1421 = vshrl.u32 %v1420, 7
    %v1422 = vsub.s32 %v1215, %v1421
    %v1423 = vrot.slane %v1143, %v1422
    %v1424 = vlaneseq
    %v1425 = vshrl.u32 %v1424, 7
    %v1426 = vsub.s32 %v1285, %v1425
    %v1427 = vrot.slane %v1145, %v1426
    %v1428 = vsel %vm1290, %v1427, %v1423
    %v1429 = vlaneseq
    %v1430 = vshrl.u32 %v1429, 7
    %v1431 = vsub.s32 %v1292, %v1430
    %v1432 = vrot.slane %v1147, %v1431
    %v1433 = vsel %vm1297, %v1432, %v1428
    %v1434 = vlaneseq
    %v1435 = vshrl.u32 %v1434, 7
    %v1436 = vsub.s32 %v1299, %v1435
    %v1437 = vrot.slane %v1149, %v1436
    %v1438 = vsel %vm1304, %v1437, %v1433
    %v1439 = vlaneseq
    %v1440 = vshrl.u32 %v1439, 7
    %v1441 = vsub.s32 %v1215, %v1440
    %v1442 = vrot.slane %v1151, %v1441
    %v1443 = vlaneseq
    %v1444 = vshrl.u32 %v1443, 7
    %v1445 = vsub.s32 %v1285, %v1444
    %v1446 = vrot.slane %v1153, %v1445
    %v1447 = vsel %vm1290, %v1446, %v1442
    %v1448 = vlaneseq
    %v1449 = vshrl.u32 %v1448, 7
    %v1450 = vsub.s32 %v1292, %v1449
    %v1451 = vrot.slane %v1155, %v1450
    %v1452 = vsel %vm1297, %v1451, %v1447
    %v1453 = vlaneseq
    %v1454 = vshrl.u32 %v1453, 7
    %v1455 = vsub.s32 %v1299, %v1454
    %v1456 = vrot.slane %v1157, %v1455
    %v1457 = vsel %vm1304, %v1456, %v1452
    %v1458 = vlaneseq
    %v1459 = vshrl.u32 %v1458, 7
    %v1460 = vsub.s32 %v1215, %v1459
    %v1461 = vrot.slane %v1159, %v1460
    %v1462 = vlaneseq
    %v1463 = vshrl.u32 %v1462, 7
    %v1464 = vsub.s32 %v1285, %v1463
    %v1465 = vrot.slane %v1161, %v1464
    %v1466 = vsel %vm1290, %v1465, %v1461
    %v1467 = vlaneseq
    %v1468 = vshrl.u32 %v1467, 7
    %v1469 = vsub.s32 %v1292, %v1468
    %v1470 = vrot.slane %v1163, %v1469
    %v1471 = vsel %vm1297, %v1470, %v1466
    %v1472 = vlaneseq
    %v1473 = vshrl.u32 %v1472, 7
    %v1474 = vsub.s32 %v1299, %v1473
    %v1475 = vrot.slane %v1165, %v1474
    %v1476 = vsel %vm1304, %v1475, %v1471
    %v1477 = vlaneseq
    %v1478 = vshrl.u32 %v1477, 7
    %v1479 = vsub.s32 %v1215, %v1478
    %v1480 = vrot.slane %v1167, %v1479
    %v1481 = vlaneseq
    %v1482 = vshrl.u32 %v1481, 7
    %v1483 = vsub.s32 %v1285, %v1482
    %v1484 = vrot.slane %v1169, %v1483
    %v1485 = vsel %vm1290, %v1484, %v1480
    %v1486 = vlaneseq
    %v1487 = vshrl.u32 %v1486, 7
    %v1488 = vsub.s32 %v1292, %v1487
    %v1489 = vrot.slane %v1171, %v1488
    %v1490 = vsel %vm1297, %v1489, %v1485
    %v1491 = vlaneseq
    %v1492 = vshrl.u32 %v1491, 7
    %v1493 = vsub.s32 %v1299, %v1492
    %v1494 = vrot.slane %v1173, %v1493
    %v1495 = vsel %vm1304, %v1494, %v1490
    %v1496 = vlaneseq
    %v1497 = vshrl.u32 %v1496, 7
    %v1498 = vsub.s32 %v1215, %v1497
    %v1499 = vrot.slane %v1175, %v1498
    %v1500 = vlaneseq
    %v1501 = vshrl.u32 %v1500, 7
    %v1502 = vsub.s32 %v1285, %v1501
    %v1503 = vrot.slane %v1177, %v1502
    %v1504 = vsel %vm1290, %v1503, %v1499
    %v1505 = vlaneseq
    %v1506 = vshrl.u32 %v1505, 7
    %v1507 = vsub.s32 %v1292, %v1506
    %v1508 = vrot.slane %v1179, %v1507
    %v1509 = vsel %vm1297, %v1508, %v1504
    %v1510 = vlaneseq
    %v1511 = vshrl.u32 %v1510, 7
    %v1512 = vsub.s32 %v1299, %v1511
    %v1513 = vrot.slane %v1181, %v1512
    %v1514 = vsel %vm1304, %v1513, %v1509
    %v1515 = vlaneseq
    %v1516 = vshrl.u32 %v1515, 7
    %v1517 = vsub.s32 %v1215, %v1516
    %v1518 = vrot.slane %v1183, %v1517
    %v1519 = vlaneseq
    %v1520 = vshrl.u32 %v1519, 7
    %v1521 = vsub.s32 %v1285, %v1520
    %v1522 = vrot.slane %v1185, %v1521
    %v1523 = vsel %vm1290, %v1522, %v1518
    %v1524 = vlaneseq
    %v1525 = vshrl.u32 %v1524, 7
    %v1526 = vsub.s32 %v1292, %v1525
    %v1527 = vrot.slane %v1187, %v1526
    %v1528 = vsel %vm1297, %v1527, %v1523
    %v1529 = vlaneseq
    %v1530 = vshrl.u32 %v1529, 7
    %v1531 = vsub.s32 %v1299, %v1530
    %v1532 = vrot.slane %v1189, %v1531
    %v1533 = vsel %vm1304, %v1532, %v1528
    %v1534 = vlaneseq
    %v1535 = vshrl.u32 %v1534, 7
    %v1536 = vsub.s32 %v1215, %v1535
    %v1537 = vrot.slane %v1191, %v1536
    %v1538 = vlaneseq
    %v1539 = vshrl.u32 %v1538, 7
    %v1540 = vsub.s32 %v1285, %v1539
    %v1541 = vrot.slane %v1193, %v1540
    %v1542 = vsel %vm1290, %v1541, %v1537
    %v1543 = vlaneseq
    %v1544 = vshrl.u32 %v1543, 7
    %v1545 = vsub.s32 %v1292, %v1544
    %v1546 = vrot.slane %v1195, %v1545
    %v1547 = vsel %vm1297, %v1546, %v1542
    %v1548 = vlaneseq
    %v1549 = vshrl.u32 %v1548, 7
    %v1550 = vsub.s32 %v1299, %v1549
    %v1551 = vrot.slane %v1197, %v1550
    %v1552 = vsel %vm1304, %v1551, %v1547
    %v1553 = vlaneseq
    %v1554 = vshrl.u32 %v1553, 7
    %v1555 = vsub.s32 %v1215, %v1554
    %v1556 = vrot.slane %v1199, %v1555
    %v1557 = vlaneseq
    %v1558 = vshrl.u32 %v1557, 7
    %v1559 = vsub.s32 %v1285, %v1558
    %v1560 = vrot.slane %v1201, %v1559
    %v1561 = vsel %vm1290, %v1560, %v1556
    %v1562 = vlaneseq
    %v1563 = vshrl.u32 %v1562, 7
    %v1564 = vsub.s32 %v1292, %v1563
    %v1565 = vrot.slane %v1203, %v1564
    %v1566 = vsel %vm1297, %v1565, %v1561
    %v1567 = vlaneseq
    %v1568 = vshrl.u32 %v1567, 7
    %v1569 = vsub.s32 %v1299, %v1568
    %v1570 = vrot.slane %v1205, %v1569
    %v1571 = vsel %vm1304, %v1570, %v1566
    %v1572 = vlaneseq
    %v1573 = vshrl.u32 %v1572, 7
    %v1574 = vsub.s32 %v1215, %v1573
    %v1575 = vrot.slane %v1207, %v1574
    %v1576 = vlaneseq
    %v1577 = vshrl.u32 %v1576, 7
    %v1578 = vsub.s32 %v1285, %v1577
    %v1579 = vrot.slane %v1209, %v1578
    %v1580 = vsel %vm1290, %v1579, %v1575
    %v1581 = vlaneseq
    %v1582 = vshrl.u32 %v1581, 7
    %v1583 = vsub.s32 %v1292, %v1582
    %v1584 = vrot.slane %v1211, %v1583
    %v1585 = vsel %vm1297, %v1584, %v1580
    %v1586 = vlaneseq
    %v1587 = vshrl.u32 %v1586, 7
    %v1588 = vsub.s32 %v1299, %v1587
    %v1589 = vrot.slane %v1213, %v1588
    %v1590 = vsel %vm1304, %v1589, %v1585
    %vm1591 = vcmask 1041409
    %v1592 = vsel %vm1591, %v1324, %v1305
    %vm1593 = vcmask 1042434
    %v1594 = vsel %vm1593, %v1343, %v1592
    %vm1595 = vcmask 1043459
    %v1596 = vsel %vm1595, %v1362, %v1594
    %vm1597 = vcmask 1044484
    %v1598 = vsel %vm1597, %v1381, %v1596
    %vm1599 = vcmask 1045509
    %v1600 = vsel %vm1599, %v1400, %v1598
    %vm1601 = vcmask 1046534
    %v1602 = vsel %vm1601, %v1419, %v1600
    %vm1603 = vcmask 1047559
    %v1604 = vsel %vm1603, %v1438, %v1602
    %v1605 = vsel %vm1591, %v1476, %v1457
    %v1606 = vsel %vm1593, %v1495, %v1605
    %v1607 = vsel %vm1595, %v1514, %v1606
    %v1608 = vsel %vm1597, %v1533, %v1607
    %v1609 = vsel %vm1599, %v1552, %v1608
    %v1610 = vsel %vm1601, %v1571, %v1609
    %v1611 = vsel %vm1603, %v1590, %v1610
    %v1614 = vsel %vm1216, %v1604, -1e+30
    %v1615 = vsel %vm1216, %v1611, -1e+30
    %vm1616 = vcmask 261120
    %v1617 = vsel %vm1616, %v1614, -inf
    %1618 = vmax.xlane.f32.xlu0 %v1617
    %v1619 = vpop.xlane.xlu0 %1618
    %v1620 = vsel %vm1616, %v1615, -inf
    %1621 = vmax.xlane.f32.xlu0 %v1620
    %v1622 = vpop.xlane.xlu0 %1621
    %v1623 = vsub.f32 %v1614, %v1619
    %v1624 = vsub.f32 %v1615, %v1622
    %v1625 = vmul.f32 %v1623, 1.442695
    %v1626 = vpow.pop %v1625
    %v1627 = vmul.f32 %v1624, 1.442695
    %v1628 = vpow.pop %v1627
    %v1629 = vsel %vm1616, %v1626, 0.0
    %1630 = vadd.xlane.f32.xlu0 %v1629
    %v1631 = vpop.xlane.xlu0 %1630
    %v1632 = vsel %vm1616, %v1628, 0.0
    %1633 = vadd.xlane.f32.xlu0 %v1632
    %v1634 = vpop.xlane.xlu0 %1633
    %v1635 = vrcp.pop %v1631
    %v1636 = vrcp.pop %v1634
    %v1637 = vmul.f32 %v1626, %v1635
    %v1638 = vmul.f32 %v1628, %v1636
    %1639 = vst.msk [vmem:[#allocation9] sm:$0xff] %vm1616, %v1637
    %1640 = vst.msk [vmem:[#allocation9 + $0x8] sm:$0xff] %vm1616, %v1638
    %v1641 = vunpack.c.l.bf16 %v63
    %v1642 = vunpack.c.l.bf16 %v64
    %v1643 = vunpack.c.l.bf16 %v65
    %v1644 = vunpack.c.l.bf16 %v66
    %v1645 = vunpack.c.l.bf16 %v67
    %v1646 = vunpack.c.l.bf16 %v68
    %v1647 = vunpack.c.l.bf16 %v69
    %v1648 = vunpack.c.l.bf16 %v70
    %v1649 = vunpack.c.l.bf16 %v71
    %v1650 = vunpack.c.l.bf16 %v72
    %v1651 = vunpack.c.l.bf16 %v73
    %v1652 = vunpack.c.l.bf16 %v74
    %v1653 = vunpack.c.l.bf16 %v75
    %v1654 = vunpack.c.l.bf16 %v76
    %v1655 = vunpack.c.l.bf16 %v77
    %v1656 = vunpack.c.l.bf16 %v78
    %v1657 = vunpack.c.l.bf16 %v79
    %v1658 = vunpack.c.l.bf16 %v80
    %v1659 = vunpack.c.l.bf16 %v81
    %v1660 = vunpack.c.l.bf16 %v82
    %v1661 = vunpack.c.l.bf16 %v83
    %v1662 = vunpack.c.l.bf16 %v84
    %v1663 = vunpack.c.l.bf16 %v85
    %v1664 = vunpack.c.l.bf16 %v86
    %v1665 = vunpack.c.l.bf16 %v87
    %v1666 = vunpack.c.l.bf16 %v88
    %v1667 = vunpack.c.l.bf16 %v89
    %v1668 = vunpack.c.l.bf16 %v90
    %v1669 = vunpack.c.l.bf16 %v91
    %v1670 = vunpack.c.l.bf16 %v92
    %v1671 = vunpack.c.l.bf16 %v93
    %v1672 = vunpack.c.l.bf16 %v94
    %v1673 = vunpack.c.l.bf16 %v95
    %v1674 = vunpack.c.l.bf16 %v96
    %v1675 = vunpack.c.l.bf16 %v97
    %v1676 = vunpack.c.l.bf16 %v98
    %v1677 = vunpack.c.l.bf16 %v99
    %v1678 = vunpack.c.l.bf16 %v100
    %v1679 = vunpack.c.l.bf16 %v101
    %v1680 = vunpack.c.l.bf16 %v102
    %v1681 = vunpack.c.l.bf16 %v103
    %v1682 = vunpack.c.l.bf16 %v104
    %v1683 = vunpack.c.l.bf16 %v105
    %v1684 = vunpack.c.l.bf16 %v106
    %v1685 = vunpack.c.l.bf16 %v107
    %v1686 = vunpack.c.l.bf16 %v108
    %v1687 = vunpack.c.l.bf16 %v109
    %v1688 = vunpack.c.l.bf16 %v110
    %v1689 = vunpack.c.l.bf16 %v111
    %v1690 = vunpack.c.l.bf16 %v112
    %v1691 = vunpack.c.l.bf16 %v113
    %v1692 = vunpack.c.l.bf16 %v114
    %v1693 = vunpack.c.l.bf16 %v115
    %v1694 = vunpack.c.l.bf16 %v116
    %v1695 = vunpack.c.l.bf16 %v117
    %v1696 = vunpack.c.l.bf16 %v118
    %v1697 = vunpack.c.l.bf16 %v119
    %v1698 = vunpack.c.l.bf16 %v120
    %v1699 = vunpack.c.l.bf16 %v121
    %v1700 = vunpack.c.l.bf16 %v122
    %v1701 = vunpack.c.l.bf16 %v123
    %v1702 = vunpack.c.l.bf16 %v124
    %v1703 = vunpack.c.l.bf16 %v125
    %v1704 = vunpack.c.l.bf16 %v126
    %v1705 = vlaneseq
    %v1706 = vshrl.u32 %v1705, 7
    %v1707 = vsub.s32 0, %v1706
    %v1708 = vrot.slane %v1637, %v1707
    %1710 = vbcast.lane.b32.xlu0 %v1708, 256
    %v1711 = vpop.permute.xlu0 %1710
    %s1713 = sor.u32 256, 8
    %1714 = vbcast.lane.b32.xlu0 %v1708, %s1713
    %v1715 = vpop.permute.xlu0 %1714
    %s1717 = sor.u32 256, 16
    %1718 = vbcast.lane.b32.xlu0 %v1708, %s1717
    %v1719 = vpop.permute.xlu0 %1718
    %s1721 = sor.u32 256, 24
    %1722 = vbcast.lane.b32.xlu0 %v1708, %s1721
    %v1723 = vpop.permute.xlu0 %1722
    %v1724 = vlaneseq
    %v1725 = vshrl.u32 %v1724, 7
    %v1726 = vsub.s32 1, %v1725
    %v1727 = vrot.slane %v1637, %v1726
    %1729 = vbcast.lane.b32.xlu0 %v1727, 256
    %v1730 = vpop.permute.xlu0 %1729
    %s1732 = sor.u32 256, 8
    %1733 = vbcast.lane.b32.xlu0 %v1727, %s1732
    %v1734 = vpop.permute.xlu0 %1733
    %s1736 = sor.u32 256, 16
    %1737 = vbcast.lane.b32.xlu0 %v1727, %s1736
    %v1738 = vpop.permute.xlu0 %1737
    %s1740 = sor.u32 256, 24
    %1741 = vbcast.lane.b32.xlu0 %v1727, %s1740
    %v1742 = vpop.permute.xlu0 %1741
    %v1743 = vlaneseq
    %v1744 = vshrl.u32 %v1743, 7
    %v1745 = vsub.s32 2, %v1744
    %v1746 = vrot.slane %v1637, %v1745
    %1748 = vbcast.lane.b32.xlu0 %v1746, 256
    %v1749 = vpop.permute.xlu0 %1748
    %s1751 = sor.u32 256, 8
    %1752 = vbcast.lane.b32.xlu0 %v1746, %s1751
    %v1753 = vpop.permute.xlu0 %1752
    %s1755 = sor.u32 256, 16
    %1756 = vbcast.lane.b32.xlu0 %v1746, %s1755
    %v1757 = vpop.permute.xlu0 %1756
    %s1759 = sor.u32 256, 24
    %1760 = vbcast.lane.b32.xlu0 %v1746, %s1759
    %v1761 = vpop.permute.xlu0 %1760
    %v1762 = vlaneseq
    %v1763 = vshrl.u32 %v1762, 7
    %v1764 = vsub.s32 3, %v1763
    %v1765 = vrot.slane %v1637, %v1764
    %1767 = vbcast.lane.b32.xlu0 %v1765, 256
    %v1768 = vpop.permute.xlu0 %1767
    %s1770 = sor.u32 256, 8
    %1771 = vbcast.lane.b32.xlu0 %v1765, %s1770
    %v1772 = vpop.permute.xlu0 %1771
    %s1774 = sor.u32 256, 16
    %1775 = vbcast.lane.b32.xlu0 %v1765, %s1774
    %v1776 = vpop.permute.xlu0 %1775
    %s1778 = sor.u32 256, 24
    %1779 = vbcast.lane.b32.xlu0 %v1765, %s1778
    %v1780 = vpop.permute.xlu0 %1779
    %v1781 = vlaneseq
    %v1782 = vshrl.u32 %v1781, 7
    %v1783 = vsub.s32 4, %v1782
    %v1784 = vrot.slane %v1637, %v1783
    %1786 = vbcast.lane.b32.xlu0 %v1784, 256
    %v1787 = vpop.permute.xlu0 %1786
    %s1789 = sor.u32 256, 8
    %1790 = vbcast.lane.b32.xlu0 %v1784, %s1789
    %v1791 = vpop.permute.xlu0 %1790
    %s1793 = sor.u32 256, 16
    %1794 = vbcast.lane.b32.xlu0 %v1784, %s1793
    %v1795 = vpop.permute.xlu0 %1794
    %s1797 = sor.u32 256, 24
    %1798 = vbcast.lane.b32.xlu0 %v1784, %s1797
    %v1799 = vpop.permute.xlu0 %1798
    %v1800 = vlaneseq
    %v1801 = vshrl.u32 %v1800, 7
    %v1802 = vsub.s32 5, %v1801
    %v1803 = vrot.slane %v1637, %v1802
    %1805 = vbcast.lane.b32.xlu0 %v1803, 256
    %v1806 = vpop.permute.xlu0 %1805
    %s1808 = sor.u32 256, 8
    %1809 = vbcast.lane.b32.xlu0 %v1803, %s1808
    %v1810 = vpop.permute.xlu0 %1809
    %s1812 = sor.u32 256, 16
    %1813 = vbcast.lane.b32.xlu0 %v1803, %s1812
    %v1814 = vpop.permute.xlu0 %1813
    %s1816 = sor.u32 256, 24
    %1817 = vbcast.lane.b32.xlu0 %v1803, %s1816
    %v1818 = vpop.permute.xlu0 %1817
    %v1819 = vlaneseq
    %v1820 = vshrl.u32 %v1819, 7
    %v1821 = vsub.s32 6, %v1820
    %v1822 = vrot.slane %v1637, %v1821
    %1824 = vbcast.lane.b32.xlu0 %v1822, 256
    %v1825 = vpop.permute.xlu0 %1824
    %s1827 = sor.u32 256, 8
    %1828 = vbcast.lane.b32.xlu0 %v1822, %s1827
    %v1829 = vpop.permute.xlu0 %1828
    %s1831 = sor.u32 256, 16
    %1832 = vbcast.lane.b32.xlu0 %v1822, %s1831
    %v1833 = vpop.permute.xlu0 %1832
    %s1835 = sor.u32 256, 24
    %1836 = vbcast.lane.b32.xlu0 %v1822, %s1835
    %v1837 = vpop.permute.xlu0 %1836
    %v1838 = vlaneseq
    %v1839 = vshrl.u32 %v1838, 7
    %v1840 = vsub.s32 7, %v1839
    %v1841 = vrot.slane %v1637, %v1840
    %1843 = vbcast.lane.b32.xlu0 %v1841, 256
    %v1844 = vpop.permute.xlu0 %1843
    %s1846 = sor.u32 256, 8
    %1847 = vbcast.lane.b32.xlu0 %v1841, %s1846
    %v1848 = vpop.permute.xlu0 %1847
    %s1850 = sor.u32 256, 16
    %1851 = vbcast.lane.b32.xlu0 %v1841, %s1850
    %v1852 = vpop.permute.xlu0 %1851
    %s1854 = sor.u32 256, 24
    %1855 = vbcast.lane.b32.xlu0 %v1841, %s1854
    %v1856 = vpop.permute.xlu0 %1855
    %v1857 = vlaneseq
    %v1858 = vshrl.u32 %v1857, 7
    %v1859 = vsub.s32 0, %v1858
    %v1860 = vrot.slane %v1638, %v1859
    %1862 = vbcast.lane.b32.xlu0 %v1860, 256
    %v1863 = vpop.permute.xlu0 %1862
    %s1865 = sor.u32 256, 8
    %1866 = vbcast.lane.b32.xlu0 %v1860, %s1865
    %v1867 = vpop.permute.xlu0 %1866
    %s1869 = sor.u32 256, 16
    %1870 = vbcast.lane.b32.xlu0 %v1860, %s1869
    %v1871 = vpop.permute.xlu0 %1870
    %s1873 = sor.u32 256, 24
    %1874 = vbcast.lane.b32.xlu0 %v1860, %s1873
    %v1875 = vpop.permute.xlu0 %1874
    %v1876 = vlaneseq
    %v1877 = vshrl.u32 %v1876, 7
    %v1878 = vsub.s32 1, %v1877
    %v1879 = vrot.slane %v1638, %v1878
    %1881 = vbcast.lane.b32.xlu0 %v1879, 256
    %v1882 = vpop.permute.xlu0 %1881
    %s1884 = sor.u32 256, 8
    %1885 = vbcast.lane.b32.xlu0 %v1879, %s1884
    %v1886 = vpop.permute.xlu0 %1885
    %s1888 = sor.u32 256, 16
    %1889 = vbcast.lane.b32.xlu0 %v1879, %s1888
    %v1890 = vpop.permute.xlu0 %1889
    %s1892 = sor.u32 256, 24
    %1893 = vbcast.lane.b32.xlu0 %v1879, %s1892
    %v1894 = vpop.permute.xlu0 %1893
    %v1895 = vlaneseq
    %v1896 = vshrl.u32 %v1895, 7
    %v1897 = vsub.s32 2, %v1896
    %v1898 = vrot.slane %v1638, %v1897
    %1900 = vbcast.lane.b32.xlu0 %v1898, 256
    %v1901 = vpop.permute.xlu0 %1900
    %s1903 = sor.u32 256, 8
    %1904 = vbcast.lane.b32.xlu0 %v1898, %s1903
    %v1905 = vpop.permute.xlu0 %1904
    %s1907 = sor.u32 256, 16
    %1908 = vbcast.lane.b32.xlu0 %v1898, %s1907
    %v1909 = vpop.permute.xlu0 %1908
    %s1911 = sor.u32 256, 24
    %1912 = vbcast.lane.b32.xlu0 %v1898, %s1911
    %v1913 = vpop.permute.xlu0 %1912
    %v1914 = vlaneseq
    %v1915 = vshrl.u32 %v1914, 7
    %v1916 = vsub.s32 3, %v1915
    %v1917 = vrot.slane %v1638, %v1916
    %1919 = vbcast.lane.b32.xlu0 %v1917, 256
    %v1920 = vpop.permute.xlu0 %1919
    %s1922 = sor.u32 256, 8
    %1923 = vbcast.lane.b32.xlu0 %v1917, %s1922
    %v1924 = vpop.permute.xlu0 %1923
    %s1926 = sor.u32 256, 16
    %1927 = vbcast.lane.b32.xlu0 %v1917, %s1926
    %v1928 = vpop.permute.xlu0 %1927
    %s1930 = sor.u32 256, 24
    %1931 = vbcast.lane.b32.xlu0 %v1917, %s1930
    %v1932 = vpop.permute.xlu0 %1931
    %v1933 = vlaneseq
    %v1934 = vshrl.u32 %v1933, 7
    %v1935 = vsub.s32 4, %v1934
    %v1936 = vrot.slane %v1638, %v1935
    %1938 = vbcast.lane.b32.xlu0 %v1936, 256
    %v1939 = vpop.permute.xlu0 %1938
    %s1941 = sor.u32 256, 8
    %1942 = vbcast.lane.b32.xlu0 %v1936, %s1941
    %v1943 = vpop.permute.xlu0 %1942
    %s1945 = sor.u32 256, 16
    %1946 = vbcast.lane.b32.xlu0 %v1936, %s1945
    %v1947 = vpop.permute.xlu0 %1946
    %s1949 = sor.u32 256, 24
    %1950 = vbcast.lane.b32.xlu0 %v1936, %s1949
    %v1951 = vpop.permute.xlu0 %1950
    %v1952 = vlaneseq
    %v1953 = vshrl.u32 %v1952, 7
    %v1954 = vsub.s32 5, %v1953
    %v1955 = vrot.slane %v1638, %v1954
    %1957 = vbcast.lane.b32.xlu0 %v1955, 256
    %v1958 = vpop.permute.xlu0 %1957
    %s1960 = sor.u32 256, 8
    %1961 = vbcast.lane.b32.xlu0 %v1955, %s1960
    %v1962 = vpop.permute.xlu0 %1961
    %s1964 = sor.u32 256, 16
    %1965 = vbcast.lane.b32.xlu0 %v1955, %s1964
    %v1966 = vpop.permute.xlu0 %1965
    %s1968 = sor.u32 256, 24
    %1969 = vbcast.lane.b32.xlu0 %v1955, %s1968
    %v1970 = vpop.permute.xlu0 %1969
    %v1971 = vlaneseq
    %v1972 = vshrl.u32 %v1971, 7
    %v1973 = vsub.s32 6, %v1972
    %v1974 = vrot.slane %v1638, %v1973
    %1976 = vbcast.lane.b32.xlu0 %v1974, 256
    %v1977 = vpop.permute.xlu0 %1976
    %s1979 = sor.u32 256, 8
    %1980 = vbcast.lane.b32.xlu0 %v1974, %s1979
    %v1981 = vpop.permute.xlu0 %1980
    %s1983 = sor.u32 256, 16
    %1984 = vbcast.lane.b32.xlu0 %v1974, %s1983
    %v1985 = vpop.permute.xlu0 %1984
    %s1987 = sor.u32 256, 24
    %1988 = vbcast.lane.b32.xlu0 %v1974, %s1987
    %v1989 = vpop.permute.xlu0 %1988
    %v1990 = vlaneseq
    %v1991 = vshrl.u32 %v1990, 7
    %v1992 = vsub.s32 7, %v1991
    %v1993 = vrot.slane %v1638, %v1992
    %1995 = vbcast.lane.b32.xlu0 %v1993, 256
    %v1996 = vpop.permute.xlu0 %1995
    %s1998 = sor.u32 256, 8
    %1999 = vbcast.lane.b32.xlu0 %v1993, %s1998
    %v2000 = vpop.permute.xlu0 %1999
    %s2002 = sor.u32 256, 16
    %2003 = vbcast.lane.b32.xlu0 %v1993, %s2002
    %v2004 = vpop.permute.xlu0 %2003
    %s2006 = sor.u32 256, 24
    %2007 = vbcast.lane.b32.xlu0 %v1993, %s2006
    %v2008 = vpop.permute.xlu0 %2007
    %v2009 = vmul.f32 %v1641, %v1711
    %v2010 = vmul.f32 %v1642, %v1715
    %v2011 = vmul.f32 %v1643, %v1719
    %v2012 = vmul.f32 %v1644, %v1723
    %v2013 = vmul.f32 %v1645, %v1730
    %v2014 = vmul.f32 %v1646, %v1734
    %v2015 = vmul.f32 %v1647, %v1738
    %v2016 = vmul.f32 %v1648, %v1742
    %v2017 = vmul.f32 %v1649, %v1749
    %v2018 = vmul.f32 %v1650, %v1753
    %v2019 = vmul.f32 %v1651, %v1757
    %v2020 = vmul.f32 %v1652, %v1761
    %v2021 = vmul.f32 %v1653, %v1768
    %v2022 = vmul.f32 %v1654, %v1772
    %v2023 = vmul.f32 %v1655, %v1776
    %v2024 = vmul.f32 %v1656, %v1780
    %v2025 = vmul.f32 %v1657, %v1787
    %v2026 = vmul.f32 %v1658, %v1791
    %v2027 = vmul.f32 %v1659, %v1795
    %v2028 = vmul.f32 %v1660, %v1799
    %v2029 = vmul.f32 %v1661, %v1806
    %v2030 = vmul.f32 %v1662, %v1810
    %v2031 = vmul.f32 %v1663, %v1814
    %v2032 = vmul.f32 %v1664, %v1818
    %v2033 = vmul.f32 %v1665, %v1825
    %v2034 = vmul.f32 %v1666, %v1829
    %v2035 = vmul.f32 %v1667, %v1833
    %v2036 = vmul.f32 %v1668, %v1837
    %v2037 = vmul.f32 %v1669, %v1844
    %v2038 = vmul.f32 %v1670, %v1848
    %v2039 = vmul.f32 %v1671, %v1852
    %v2040 = vmul.f32 %v1672, %v1856
    %v2041 = vmul.f32 %v1673, %v1863
    %v2042 = vmul.f32 %v1674, %v1867
    %v2043 = vmul.f32 %v1675, %v1871
    %v2044 = vmul.f32 %v1676, %v1875
    %v2045 = vmul.f32 %v1677, %v1882
    %v2046 = vmul.f32 %v1678, %v1886
    %v2047 = vmul.f32 %v1679, %v1890
    %v2048 = vmul.f32 %v1680, %v1894
    %v2049 = vmul.f32 %v1681, %v1901
    %v2050 = vmul.f32 %v1682, %v1905
    %v2051 = vmul.f32 %v1683, %v1909
    %v2052 = vmul.f32 %v1684, %v1913
    %v2053 = vmul.f32 %v1685, %v1920
    %v2054 = vmul.f32 %v1686, %v1924
    %v2055 = vmul.f32 %v1687, %v1928
    %v2056 = vmul.f32 %v1688, %v1932
    %v2057 = vmul.f32 %v1689, %v1939
    %v2058 = vmul.f32 %v1690, %v1943
    %v2059 = vmul.f32 %v1691, %v1947
    %v2060 = vmul.f32 %v1692, %v1951
    %v2061 = vmul.f32 %v1693, %v1958
    %v2062 = vmul.f32 %v1694, %v1962
    %v2063 = vmul.f32 %v1695, %v1966
    %v2064 = vmul.f32 %v1696, %v1970
    %v2065 = vmul.f32 %v1697, %v1977
    %v2066 = vmul.f32 %v1698, %v1981
    %v2067 = vmul.f32 %v1699, %v1985
    %v2068 = vmul.f32 %v1700, %v1989
    %v2069 = vmul.f32 %v1701, %v1996
    %v2070 = vmul.f32 %v1702, %v2000
    %v2071 = vmul.f32 %v1703, %v2004
    %v2072 = vmul.f32 %v1704, %v2008
    %v2073 = vsel %vm319, %v2009, 0.0
    %v2074 = vsel %vm319, %v2010, 0.0
    %v2075 = vadd.f32 %v2073, %v2074
    %v2076 = vsel %vm319, %v2011, 0.0
    %v2077 = vadd.f32 %v2075, %v2076
    %v2078 = vsel %vm319, %v2012, 0.0
    %v2079 = vadd.f32 %v2077, %v2078
    %v2080 = vrot.slane %v2079, 4
    %v2081 = vadd.f32 %v2079, %v2080
    %v2082 = vrot.slane %v2081, 2
    %v2083 = vadd.f32 %v2081, %v2082
    %v2084 = vrot.slane %v2083, 1
    %v2085 = vadd.f32 %v2083, %v2084
    %v2086 = vsel %vm319, %v2013, 0.0
    %v2087 = vsel %vm319, %v2014, 0.0
    %v2088 = vadd.f32 %v2086, %v2087
    %v2089 = vsel %vm319, %v2015, 0.0
    %v2090 = vadd.f32 %v2088, %v2089
    %v2091 = vsel %vm319, %v2016, 0.0
    %v2092 = vadd.f32 %v2090, %v2091
    %v2093 = vrot.slane %v2092, 4
    %v2094 = vadd.f32 %v2092, %v2093
    %v2095 = vrot.slane %v2094, 2
    %v2096 = vadd.f32 %v2094, %v2095
    %v2097 = vrot.slane %v2096, 1
    %v2098 = vadd.f32 %v2096, %v2097
    %v2099 = vsel %vm319, %v2017, 0.0
    %v2100 = vsel %vm319, %v2018, 0.0
    %v2101 = vadd.f32 %v2099, %v2100
    %v2102 = vsel %vm319, %v2019, 0.0
    %v2103 = vadd.f32 %v2101, %v2102
    %v2104 = vsel %vm319, %v2020, 0.0
    %v2105 = vadd.f32 %v2103, %v2104
    %v2106 = vrot.slane %v2105, 4
    %v2107 = vadd.f32 %v2105, %v2106
    %v2108 = vrot.slane %v2107, 2
    %v2109 = vadd.f32 %v2107, %v2108
    %v2110 = vrot.slane %v2109, 1
    %v2111 = vadd.f32 %v2109, %v2110
    %v2112 = vsel %vm319, %v2021, 0.0
    %v2113 = vsel %vm319, %v2022, 0.0
    %v2114 = vadd.f32 %v2112, %v2113
    %v2115 = vsel %vm319, %v2023, 0.0
    %v2116 = vadd.f32 %v2114, %v2115
    %v2117 = vsel %vm319, %v2024, 0.0
    %v2118 = vadd.f32 %v2116, %v2117
    %v2119 = vrot.slane %v2118, 4
    %v2120 = vadd.f32 %v2118, %v2119
    %v2121 = vrot.slane %v2120, 2
    %v2122 = vadd.f32 %v2120, %v2121
    %v2123 = vrot.slane %v2122, 1
    %v2124 = vadd.f32 %v2122, %v2123
    %v2125 = vsel %vm319, %v2025, 0.0
    %v2126 = vsel %vm319, %v2026, 0.0
    %v2127 = vadd.f32 %v2125, %v2126
    %v2128 = vsel %vm319, %v2027, 0.0
    %v2129 = vadd.f32 %v2127, %v2128
    %v2130 = vsel %vm319, %v2028, 0.0
    %v2131 = vadd.f32 %v2129, %v2130
    %v2132 = vrot.slane %v2131, 4
    %v2133 = vadd.f32 %v2131, %v2132
    %v2134 = vrot.slane %v2133, 2
    %v2135 = vadd.f32 %v2133, %v2134
    %v2136 = vrot.slane %v2135, 1
    %v2137 = vadd.f32 %v2135, %v2136
    %v2138 = vsel %vm319, %v2029, 0.0
    %v2139 = vsel %vm319, %v2030, 0.0
    %v2140 = vadd.f32 %v2138, %v2139
    %v2141 = vsel %vm319, %v2031, 0.0
    %v2142 = vadd.f32 %v2140, %v2141
    %v2143 = vsel %vm319, %v2032, 0.0
    %v2144 = vadd.f32 %v2142, %v2143
    %v2145 = vrot.slane %v2144, 4
    %v2146 = vadd.f32 %v2144, %v2145
    %v2147 = vrot.slane %v2146, 2
    %v2148 = vadd.f32 %v2146, %v2147
    %v2149 = vrot.slane %v2148, 1
    %v2150 = vadd.f32 %v2148, %v2149
    %v2151 = vsel %vm319, %v2033, 0.0
    %v2152 = vsel %vm319, %v2034, 0.0
    %v2153 = vadd.f32 %v2151, %v2152
    %v2154 = vsel %vm319, %v2035, 0.0
    %v2155 = vadd.f32 %v2153, %v2154
    %v2156 = vsel %vm319, %v2036, 0.0
    %v2157 = vadd.f32 %v2155, %v2156
    %v2158 = vrot.slane %v2157, 4
    %v2159 = vadd.f32 %v2157, %v2158
    %v2160 = vrot.slane %v2159, 2
    %v2161 = vadd.f32 %v2159, %v2160
    %v2162 = vrot.slane %v2161, 1
    %v2163 = vadd.f32 %v2161, %v2162
    %v2164 = vsel %vm319, %v2037, 0.0
    %v2165 = vsel %vm319, %v2038, 0.0
    %v2166 = vadd.f32 %v2164, %v2165
    %v2167 = vsel %vm319, %v2039, 0.0
    %v2168 = vadd.f32 %v2166, %v2167
    %v2169 = vsel %vm319, %v2040, 0.0
    %v2170 = vadd.f32 %v2168, %v2169
    %v2171 = vrot.slane %v2170, 4
    %v2172 = vadd.f32 %v2170, %v2171
    %v2173 = vrot.slane %v2172, 2
    %v2174 = vadd.f32 %v2172, %v2173
    %v2175 = vrot.slane %v2174, 1
    %v2176 = vadd.f32 %v2174, %v2175
    %v2177 = vsel %vm319, %v2041, 0.0
    %v2178 = vsel %vm319, %v2042, 0.0
    %v2179 = vadd.f32 %v2177, %v2178
    %v2180 = vsel %vm319, %v2043, 0.0
    %v2181 = vadd.f32 %v2179, %v2180
    %v2182 = vsel %vm319, %v2044, 0.0
    %v2183 = vadd.f32 %v2181, %v2182
    %v2184 = vrot.slane %v2183, 4
    %v2185 = vadd.f32 %v2183, %v2184
    %v2186 = vrot.slane %v2185, 2
    %v2187 = vadd.f32 %v2185, %v2186
    %v2188 = vrot.slane %v2187, 1
    %v2189 = vadd.f32 %v2187, %v2188
    %v2190 = vsel %vm319, %v2045, 0.0
    %v2191 = vsel %vm319, %v2046, 0.0
    %v2192 = vadd.f32 %v2190, %v2191
    %v2193 = vsel %vm319, %v2047, 0.0
    %v2194 = vadd.f32 %v2192, %v2193
    %v2195 = vsel %vm319, %v2048, 0.0
    %v2196 = vadd.f32 %v2194, %v2195
    %v2197 = vrot.slane %v2196, 4
    %v2198 = vadd.f32 %v2196, %v2197
    %v2199 = vrot.slane %v2198, 2
    %v2200 = vadd.f32 %v2198, %v2199
    %v2201 = vrot.slane %v2200, 1
    %v2202 = vadd.f32 %v2200, %v2201
    %v2203 = vsel %vm319, %v2049, 0.0
    %v2204 = vsel %vm319, %v2050, 0.0
    %v2205 = vadd.f32 %v2203, %v2204
    %v2206 = vsel %vm319, %v2051, 0.0
    %v2207 = vadd.f32 %v2205, %v2206
    %v2208 = vsel %vm319, %v2052, 0.0
    %v2209 = vadd.f32 %v2207, %v2208
    %v2210 = vrot.slane %v2209, 4
    %v2211 = vadd.f32 %v2209, %v2210
    %v2212 = vrot.slane %v2211, 2
    %v2213 = vadd.f32 %v2211, %v2212
    %v2214 = vrot.slane %v2213, 1
    %v2215 = vadd.f32 %v2213, %v2214
    %v2216 = vsel %vm319, %v2053, 0.0
    %v2217 = vsel %vm319, %v2054, 0.0
    %v2218 = vadd.f32 %v2216, %v2217
    %v2219 = vsel %vm319, %v2055, 0.0
    %v2220 = vadd.f32 %v2218, %v2219
    %v2221 = vsel %vm319, %v2056, 0.0
    %v2222 = vadd.f32 %v2220, %v2221
    %v2223 = vrot.slane %v2222, 4
    %v2224 = vadd.f32 %v2222, %v2223
    %v2225 = vrot.slane %v2224, 2
    %v2226 = vadd.f32 %v2224, %v2225
    %v2227 = vrot.slane %v2226, 1
    %v2228 = vadd.f32 %v2226, %v2227
    %v2229 = vsel %vm319, %v2057, 0.0
    %v2230 = vsel %vm319, %v2058, 0.0
    %v2231 = vadd.f32 %v2229, %v2230
    %v2232 = vsel %vm319, %v2059, 0.0
    %v2233 = vadd.f32 %v2231, %v2232
    %v2234 = vsel %vm319, %v2060, 0.0
    %v2235 = vadd.f32 %v2233, %v2234
    %v2236 = vrot.slane %v2235, 4
    %v2237 = vadd.f32 %v2235, %v2236
    %v2238 = vrot.slane %v2237, 2
    %v2239 = vadd.f32 %v2237, %v2238
    %v2240 = vrot.slane %v2239, 1
    %v2241 = vadd.f32 %v2239, %v2240
    %v2242 = vsel %vm319, %v2061, 0.0
    %v2243 = vsel %vm319, %v2062, 0.0
    %v2244 = vadd.f32 %v2242, %v2243
    %v2245 = vsel %vm319, %v2063, 0.0
    %v2246 = vadd.f32 %v2244, %v2245
    %v2247 = vsel %vm319, %v2064, 0.0
    %v2248 = vadd.f32 %v2246, %v2247
    %v2249 = vrot.slane %v2248, 4
    %v2250 = vadd.f32 %v2248, %v2249
    %v2251 = vrot.slane %v2250, 2
    %v2252 = vadd.f32 %v2250, %v2251
    %v2253 = vrot.slane %v2252, 1
    %v2254 = vadd.f32 %v2252, %v2253
    %v2255 = vsel %vm319, %v2065, 0.0
    %v2256 = vsel %vm319, %v2066, 0.0
    %v2257 = vadd.f32 %v2255, %v2256
    %v2258 = vsel %vm319, %v2067, 0.0
    %v2259 = vadd.f32 %v2257, %v2258
    %v2260 = vsel %vm319, %v2068, 0.0
    %v2261 = vadd.f32 %v2259, %v2260
    %v2262 = vrot.slane %v2261, 4
    %v2263 = vadd.f32 %v2261, %v2262
    %v2264 = vrot.slane %v2263, 2
    %v2265 = vadd.f32 %v2263, %v2264
    %v2266 = vrot.slane %v2265, 1
    %v2267 = vadd.f32 %v2265, %v2266
    %v2268 = vsel %vm319, %v2069, 0.0
    %v2269 = vsel %vm319, %v2070, 0.0
    %v2270 = vadd.f32 %v2268, %v2269
    %v2271 = vsel %vm319, %v2071, 0.0
    %v2272 = vadd.f32 %v2270, %v2271
    %v2273 = vsel %vm319, %v2072, 0.0
    %v2274 = vadd.f32 %v2272, %v2273
    %v2275 = vrot.slane %v2274, 4
    %v2276 = vadd.f32 %v2274, %v2275
    %v2277 = vrot.slane %v2276, 2
    %v2278 = vadd.f32 %v2276, %v2277
    %v2279 = vrot.slane %v2278, 1
    %v2280 = vadd.f32 %v2278, %v2279
    %v2297 = vsel %vm1591, %v2098, %v2085
    %v2298 = vsel %vm1593, %v2111, %v2297
    %v2299 = vsel %vm1595, %v2124, %v2298
    %v2300 = vsel %vm1597, %v2137, %v2299
    %v2301 = vsel %vm1599, %v2150, %v2300
    %v2302 = vsel %vm1601, %v2163, %v2301
    %v2303 = vsel %vm1603, %v2176, %v2302
    %v2304 = vsel %vm1591, %v2202, %v2189
    %v2305 = vsel %vm1593, %v2215, %v2304
    %v2306 = vsel %vm1595, %v2228, %v2305
    %v2307 = vsel %vm1597, %v2241, %v2306
    %v2308 = vsel %vm1599, %v2254, %v2307
    %v2309 = vsel %vm1601, %v2267, %v2308
    %v2310 = vsel %vm1603, %v2280, %v2309
    %2313 = vst.msk [vmem:[#allocation8] sm:$0xff] %vm319, %v2303
    %2314 = vst.msk [vmem:[#allocation8 + $0x8] sm:$0xff] %vm319, %v2310
    // Predicated region
    $region30: #{tpu_custom_call.1} parent=1 // pred_check
      _
    $region31: #{tpu_custom_call.1} parent=1 // pred_check_branch
      %2316 = sbr.rel (0) target = $region33
    $region32: #{tpu_custom_call.1} parent=1 // pred_region
      %s2318 = ssub.s32 256, 256
      %2319 = vsyncadd [#allocation4], %s2318
      %s2320 = sshll.u32 [#allocation8], 4
      %s2321 = int_to_ptr.vmem [resolvable:$true] %s2320
      %2326 = dma.vmem_to_hbm [thread:$0]  %s2321, 256, %s4, [#allocation4], 128, 128, 8
    $region33: #{tpu_custom_call.1} parent=1 // pred_fallthru
      _
    // Predicated region
    $region34: #{tpu_custom_call.1} parent=1 // pred_check
      _
    $region35: #{tpu_custom_call.1} parent=1 // pred_check_branch
      %2328 = sbr.rel (0) target = $region37
    $region36: #{tpu_custom_call.1} parent=1 // pred_region
      %s2330 = ssub.s32 256, 256
      %2331 = vsyncadd [#allocation10], %s2330
      %s2332 = sshll.u32 [#allocation9], 4
      %s2333 = int_to_ptr.vmem [resolvable:$true] %s2332
      %2338 = dma.vmem_to_hbm [thread:$0]  %s2333, 256, %s5, [#allocation10], 128, 128, 8
    $region37: #{tpu_custom_call.1} parent=1 // pred_fallthru
      _
    // Predicated region
    $region38: #{tpu_custom_call.1} parent=1 // pred_check
      _
    $region39: #{tpu_custom_call.1} parent=1 // pred_check_branch
      %2340 = sbr.rel (0) target = $region41
    $region40: #{tpu_custom_call.1} parent=1 // pred_region
      %2341 = dma.done [#allocation4], 256
    $region41: #{tpu_custom_call.1} parent=1 // pred_fallthru
      _
    // Predicated region
    $region42: #{tpu_custom_call.1} parent=1 // pred_check
      _
    $region43: #{tpu_custom_call.1} parent=1 // pred_check_branch
      %2343 = sbr.rel (0) target = $region45
    $region44: #{tpu_custom_call.1} parent=1 // pred_region
      %2344 = dma.done [#allocation10], 256
    $region45: #{tpu_custom_call.1} parent=1 // pred_fallthru
      _
    %2345 = vsyncpa [#allocation3], 1
    %2346 = vsyncpa [#allocation6], 1
    %2347 = vsyncpa [#allocation4], 1
    %2348 = vsyncpa [#allocation10], 1

</llo_original>
